<compile_context>
chip_gen: v7x
topology: tpu7x:2x2x1
jax: 0.10.0
libtpu: 0.0.40
codegen_flags: <defaults>
</compile_context>

<pallas_src>
import math
import jax
import jax.numpy as jnp
from jax.experimental import pallas as pl
from jax.experimental.pallas import tpu as pltpu

N_IN = 512
H1 = 512
H2 = 256
N_CLS = 2
N_CLS_PAD = 128  # lane-aligned padding for the final layer


def _mlp_logsoftmax_kernel(x_ref, w1_ref, b1_ref, w2_ref, b2_ref, w3_ref, b3_ref,
                           o_ref):
    # Cast to bf16 only at the MXU inputs; all elementwise math stays f32.
    x = x_ref[...].astype(jnp.bfloat16)                               # (Tb, 512)

    # d_fc1 + d_relu1  (d_drop1 is identity in eval)
    h1 = jnp.dot(x, w1_ref[...], preferred_element_type=jnp.float32) + b1_ref[...]
    h1 = jnp.maximum(h1, 0.0)

    # d_fc2 + d_relu2  (d_drop2 is identity in eval)
    h2 = jnp.dot(h1.astype(jnp.bfloat16), w2_ref[...],
                 preferred_element_type=jnp.float32) + b2_ref[...]
    h2 = jnp.maximum(h2, 0.0)

    # d_fc3 (padded to 128 output lanes; pad columns carry zero weights/bias)
    logits = jnp.dot(h2.astype(jnp.bfloat16), w3_ref[...],
                     preferred_element_type=jnp.float32) + b3_ref[...]

    # mask padded classes so they contribute nothing to the softmax denominator
    col = jax.lax.broadcasted_iota(jnp.int32, logits.shape, 1)
    masked = jnp.where(col < N_CLS, logits, -1e30)

    # numerically stable log-softmax over dim=1 (f32 throughout)
    m = jnp.max(masked, axis=1, keepdims=True)
    lse = m + jnp.log(jnp.sum(jnp.exp(masked - m), axis=1, keepdims=True))
    o_ref[...] = masked - lse


def domain_discriminator_forward(x, params):
    """x: (B, ...) with prod(...) == 512  ->  log-probabilities (B, 2)."""
    B = x.shape[0]
    feature = x.reshape(B, -1)                      # no astype: keep native dtype
    assert feature.shape[1] == N_IN

    w1, b1, w2, b2, w3p, b3p = params

    # Batch tile: multiple of 256 (MXU M-dim on v6e/v7x) when B is large,
    # otherwise a sublane-aligned tile covering the whole (small) batch.
    if B >= 256:
        tile_b = 256
    else:
        tile_b = max(8, ((B + 7) // 8) * 8)
    b_pad = ((B + tile_b - 1) // tile_b) * tile_b
    if b_pad != B:
        feature = jnp.pad(feature, ((0, b_pad - B), (0, 0)))

    grid = (b_pad // tile_b,)

    def act_spec(shape):
        return pl.BlockSpec(shape, lambda i: (i, 0))      # tiled over batch

    def pin_spec(shape):
        return pl.BlockSpec(shape, lambda i: (0, 0))      # resident weights

    out_pad = pl.pallas_call(
        _mlp_logsoftmax_kernel,
        out_shape=jax.ShapeDtypeStruct((b_pad, N_CLS_PAD), jnp.float32),
        grid=grid,
        in_specs=[
            act_spec((tile_b, N_IN)),
            pin_spec((N_IN, H1)), pin_spec((1, H1)),
            pin_spec((H1, H2)), pin_spec((1, H2)),
            pin_spec((H2, N_CLS_PAD)), pin_spec((1, N_CLS_PAD)),
        ],
        out_specs=act_spec((tile_b, N_CLS_PAD)),
        compiler_params=pltpu.CompilerParams(
            dimension_semantics=("parallel",),
            vmem_limit_bytes=32 << 20,
        ),
    )(feature, w1, b1, w2, b2, w3p, b3p)

    return out_pad[:B, :N_CLS]                                        # (B, 2)


def init_params(key):
    """Deterministic init mimicking kaiming_uniform_ on weights and the default
    PyTorch Linear bias init. Weights stored as (in, out) in bf16; biases f32."""
    ks = jax.random.split(key, 6)

    def kaiming_uniform(k, fan_in, fan_out):
        # gain=sqrt(2) (leaky_relu, a=0), mode='fan_in' -> bound = sqrt(6/fan_in)
        bound = math.sqrt(6.0 / fan_in)
        return jax.random.uniform(k, (fan_in, fan_out), jnp.float32, -bound, bound)

    def bias_init(k, fan_in, fan_out):
        bound = 1.0 / math.sqrt(fan_in)
        return jax.random.uniform(k, (1, fan_out), jnp.float32, -bound, bound)

    w1 = kaiming_uniform(ks[0], N_IN, H1)
    b1 = bias_init(ks[1], N_IN, H1)
    w2 = kaiming_uniform(ks[2], H1, H2)
    b2 = bias_init(ks[3], H1, H2)
    w3 = kaiming_uniform(ks[4], H2, N_CLS)
    b3 = bias_init(ks[5], H2, N_CLS)

    # zero-pad the final layer to 128 output lanes
    w3p = jnp.zeros((H2, N_CLS_PAD), jnp.float32).at[:, :N_CLS].set(w3)
    b3p = jnp.zeros((1, N_CLS_PAD), jnp.float32).at[:, :N_CLS].set(b3)

    # weights in bf16 (halves weight HBM traffic; MXU-native on v5e/v6e/v7x),
    # biases stay f32 (added after f32 accumulation).
    return (w1.astype(jnp.bfloat16), b1,
            w2.astype(jnp.bfloat16), b2,
            w3p.astype(jnp.bfloat16), b3p)


if __name__ == "__main__":
    key = jax.random.PRNGKey(0)
    pkey, xkey = jax.random.split(key)

    params = init_params(pkey)

    # batch=8 of (2, 16, 16) maps -> flattens to 512 features (2*16*16 = 512)
    x = jax.random.normal(xkey, (8, 2, 16, 16), jnp.float32)

    out = domain_discriminator_forward(x, params)
    out = jax.block_until_ready(out)

    assert out.shape == (8, N_CLS)
    # log-softmax rows must (approximately) exponentiate-and-sum to 1
    assert jnp.allclose(jnp.sum(jnp.exp(out), axis=1), 1.0, atol=1e-3)

    print("KERNEL_OK")
</pallas_src>

<mosaic_0001>
module attributes {stable_mosaic.version = 11 : i64} {
  func.func @_mlp_logsoftmax_kernel(%arg0: i32, %arg1: memref<8x512xf32, #tpu.memory_space<vmem>>, %arg2: memref<512x512xbf16, #tpu.memory_space<vmem>>, %arg3: memref<1x512xf32, #tpu.memory_space<vmem>>, %arg4: memref<512x256xbf16, #tpu.memory_space<vmem>>, %arg5: memref<1x256xf32, #tpu.memory_space<vmem>>, %arg6: memref<256x128xbf16, #tpu.memory_space<vmem>>, %arg7: memref<1x128xf32, #tpu.memory_space<vmem>>, %arg8: memref<8x128xf32, #tpu.memory_space<vmem>>) attributes {dimension_semantics = [#tpu.dimension_semantics<parallel>], iteration_bounds = array<i64: 1>, scalar_prefetch = 0 : i64, scratch_operands = 0 : i64, tpu.core_type = #tpu.core_type<tc>, window_params = [{transform_indices = @transform_0, window_bounds = array<i64: 8, 512>}, {pipeline_mode = #tpu.pipeline_mode<synchronous>, transform_indices = @transform_1, window_bounds = array<i64: 512, 512>}, {pipeline_mode = #tpu.pipeline_mode<synchronous>, transform_indices = @transform_2, window_bounds = array<i64: 1, 512>}, {pipeline_mode = #tpu.pipeline_mode<synchronous>, transform_indices = @transform_3, window_bounds = array<i64: 512, 256>}, {pipeline_mode = #tpu.pipeline_mode<synchronous>, transform_indices = @transform_4, window_bounds = array<i64: 1, 256>}, {pipeline_mode = #tpu.pipeline_mode<synchronous>, transform_indices = @transform_5, window_bounds = array<i64: 256, 128>}, {pipeline_mode = #tpu.pipeline_mode<synchronous>, transform_indices = @transform_6, window_bounds = array<i64: 1, 128>}, {transform_indices = @transform_7, window_bounds = array<i64: 8, 128>}]} {
    %c0 = arith.constant 0 : index
    %c0_0 = arith.constant 0 : index
    %0 = vector.load %arg1[%c0, %c0_0] : memref<8x512xf32, #tpu.memory_space<vmem>>, vector<8x512xf32>
    %1 = arith.truncf %0 : vector<8x512xf32> to vector<8x512xbf16>
    %c0_1 = arith.constant 0 : index
    %c0_2 = arith.constant 0 : index
    %2 = vector.load %arg2[%c0_1, %c0_2] : memref<512x512xbf16, #tpu.memory_space<vmem>>, vector<512x512xbf16>
    %cst = arith.constant dense<0.000000e+00> : vector<8x512xf32>
    %3 = tpu.matmul %1, %2, %cst {dimension_numbers = #tpu.dot_dimension_numbers<[1], [0], [0], [1], [0, 0, 1, 1], [], []>} : vector<8x512xbf16>, vector<512x512xbf16>, vector<8x512xf32> -> vector<8x512xf32>
    %c0_3 = arith.constant 0 : index
    %c0_4 = arith.constant 0 : index
    %4 = vector.load %arg3[%c0_3, %c0_4] : memref<1x512xf32, #tpu.memory_space<vmem>>, vector<1x512xf32>
    %5 = vector.broadcast %4 : vector<1x512xf32> to vector<8x512xf32>
    %6 = arith.addf %3, %5 : vector<8x512xf32>
    %cst_5 = arith.constant 0.000000e+00 : f32
    %7 = vector.broadcast %cst_5 : f32 to vector<8x512xf32>
    %8 = arith.maximumf %6, %7 : vector<8x512xf32>
    %9 = arith.truncf %8 : vector<8x512xf32> to vector<8x512xbf16>
    %c0_6 = arith.constant 0 : index
    %c0_7 = arith.constant 0 : index
    %10 = vector.load %arg4[%c0_6, %c0_7] : memref<512x256xbf16, #tpu.memory_space<vmem>>, vector<512x256xbf16>
    %cst_8 = arith.constant dense<0.000000e+00> : vector<8x256xf32>
    %11 = tpu.matmul %9, %10, %cst_8 {dimension_numbers = #tpu.dot_dimension_numbers<[1], [0], [0], [1], [0, 0, 1, 1], [], []>} : vector<8x512xbf16>, vector<512x256xbf16>, vector<8x256xf32> -> vector<8x256xf32>
    %c0_9 = arith.constant 0 : index
    %c0_10 = arith.constant 0 : index
    %12 = vector.load %arg5[%c0_9, %c0_10] : memref<1x256xf32, #tpu.memory_space<vmem>>, vector<1x256xf32>
    %13 = vector.broadcast %12 : vector<1x256xf32> to vector<8x256xf32>
    %14 = arith.addf %11, %13 : vector<8x256xf32>
    %cst_11 = arith.constant 0.000000e+00 : f32
    %15 = vector.broadcast %cst_11 : f32 to vector<8x256xf32>
    %16 = arith.maximumf %14, %15 : vector<8x256xf32>
    %17 = arith.truncf %16 : vector<8x256xf32> to vector<8x256xbf16>
    %c0_12 = arith.constant 0 : index
    %c0_13 = arith.constant 0 : index
    %18 = vector.load %arg6[%c0_12, %c0_13] : memref<256x128xbf16, #tpu.memory_space<vmem>>, vector<256x128xbf16>
    %cst_14 = arith.constant dense<0.000000e+00> : vector<8x128xf32>
    %19 = tpu.matmul %17, %18, %cst_14 {dimension_numbers = #tpu.dot_dimension_numbers<[1], [0], [0], [1], [0, 0, 1, 1], [], []>} : vector<8x256xbf16>, vector<256x128xbf16>, vector<8x128xf32> -> vector<8x128xf32>
    %c0_15 = arith.constant 0 : index
    %c0_16 = arith.constant 0 : index
    %20 = vector.load %arg7[%c0_15, %c0_16] : memref<1x128xf32, #tpu.memory_space<vmem>>, vector<1x128xf32>
    %21 = vector.broadcast %20 : vector<1x128xf32> to vector<8x128xf32>
    %22 = arith.addf %19, %21 : vector<8x128xf32>
    %23 = tpu.iota {dimensions = array<i32: 1>} : vector<8x128xi32>
    %c2_i32 = arith.constant 2 : i32
    %24 = vector.broadcast %c2_i32 : i32 to vector<8x128xi32>
    %25 = arith.cmpi slt, %23, %24 : vector<8x128xi32>
    %cst_17 = arith.constant -1.000000e+30 : f32
    %26 = vector.broadcast %cst_17 : f32 to vector<8x128xf32>
    %27 = arith.select %25, %22, %26 : vector<8x128xi1>, vector<8x128xf32>
    %cst_18 = arith.constant dense<0xFF800000> : vector<8xf32>
    %28 = vector.multi_reduction <maximumf>, %27, %cst_18 [1] : vector<8x128xf32> to vector<8xf32>
    %29 = vector.shape_cast %28 : vector<8xf32> to vector<8x1xf32>
    %30 = vector.broadcast %29 : vector<8x1xf32> to vector<8x128xf32>
    %31 = arith.subf %27, %30 : vector<8x128xf32>
    %32 = math.exp %31 : vector<8x128xf32>
    %cst_19 = arith.constant dense<0.000000e+00> : vector<8xf32>
    %33 = vector.multi_reduction <add>, %32, %cst_19 [1] : vector<8x128xf32> to vector<8xf32>
    %34 = vector.shape_cast %33 : vector<8xf32> to vector<8x1xf32>
    %35 = math.log %34 : vector<8x1xf32>
    %36 = arith.addf %29, %35 : vector<8x1xf32>
    %37 = vector.broadcast %36 : vector<8x1xf32> to vector<8x128xf32>
    %38 = arith.subf %27, %37 : vector<8x128xf32>
    %c0_20 = arith.constant 0 : index
    %c0_21 = arith.constant 0 : index
    %39 = vector.load %arg8[%c0_20, %c0_21] : memref<8x128xf32, #tpu.memory_space<vmem>>, vector<8x128xf32>
    tpu.vector_store %arg8[%c0_20, %c0_21], %38 {strides = array<i32>} : memref<8x128xf32, #tpu.memory_space<vmem>>, vector<8x128xf32>,
    return
  }
  func.func @transform_0(%arg0: i32) -> (i32, i32) {
    %c0_i32 = arith.constant 0 : i32
    %c0_i32_0 = arith.constant 0 : i32
    return %arg0, %c0_i32 : i32, i32
  }
  func.func @transform_1(%arg0: i32) -> (i32, i32) {
    %c0_i32 = arith.constant 0 : i32
    %c0_i32_0 = arith.constant 0 : i32
    %c0_i32_1 = arith.constant 0 : i32
    return %c0_i32, %c0_i32_0 : i32, i32
  }
  func.func @transform_2(%arg0: i32) -> (i32, i32) {
    %c0_i32 = arith.constant 0 : i32
    %c0_i32_0 = arith.constant 0 : i32
    %c0_i32_1 = arith.constant 0 : i32
    return %c0_i32, %c0_i32_0 : i32, i32
  }
  func.func @transform_3(%arg0: i32) -> (i32, i32) {
    %c0_i32 = arith.constant 0 : i32
    %c0_i32_0 = arith.constant 0 : i32
    %c0_i32_1 = arith.constant 0 : i32
    return %c0_i32, %c0_i32_0 : i32, i32
  }
  func.func @transform_4(%arg0: i32) -> (i32, i32) {
    %c0_i32 = arith.constant 0 : i32
    %c0_i32_0 = arith.constant 0 : i32
    %c0_i32_1 = arith.constant 0 : i32
    return %c0_i32, %c0_i32_0 : i32, i32
  }
  func.func @transform_5(%arg0: i32) -> (i32, i32) {
    %c0_i32 = arith.constant 0 : i32
    %c0_i32_0 = arith.constant 0 : i32
    %c0_i32_1 = arith.constant 0 : i32
    return %c0_i32, %c0_i32_0 : i32, i32
  }
  func.func @transform_6(%arg0: i32) -> (i32, i32) {
    %c0_i32 = arith.constant 0 : i32
    %c0_i32_0 = arith.constant 0 : i32
    %c0_i32_1 = arith.constant 0 : i32
    return %c0_i32, %c0_i32_0 : i32, i32
  }
  func.func @transform_7(%arg0: i32) -> (i32, i32) {
    %c0_i32 = arith.constant 0 : i32
    %c0_i32_0 = arith.constant 0 : i32
    return %arg0, %c0_i32 : i32, i32
  }
}

</mosaic_0001>

<llo_original>
// kernel: tpu_custom_call.1
$region0: #{tpu_custom_call.1}
  #allocation0 [shape = 'u32[]', space=smem, size = 0x4, offset = 0x4, fixed_abs, tag = 'smem constant byte address 0x4 - core index']
  #allocation1 [shape = 'u32[144,128]{1,0:T(1,128)}', space=vmem, size = 0x12000, scoped, tag = 'internal scratch']
  %s0 = inlined_call_operand.hbm [shape: f32[8,512], index: 0, kind: input, shape index: {}]
  %s1 = inlined_call_operand.hbm [shape: bf16[512,512], index: 1, kind: input, shape index: {}]
  %s2 = inlined_call_operand.vmem [shape: f32[1,512], index: 2, kind: input, shape index: {}]
  %s3 = inlined_call_operand.hbm [shape: bf16[512,256], index: 3, kind: input, shape index: {}]
  %s4 = inlined_call_operand.vmem [shape: f32[1,256], index: 4, kind: input, shape index: {}]
  %s5 = inlined_call_operand.hbm [shape: bf16[256,128], index: 5, kind: input, shape index: {}]
  %s6 = inlined_call_operand.vmem [shape: f32[1,128], index: 6, kind: input, shape index: {}]
  %s7 = inlined_call_operand.hbm [shape: f32[8,128], index: 7, kind: output, shape index: {}]
  %s8 = sld [smem:[#allocation0]]
  $region54: #{tpu_custom_call.1} parent=0
    _
  %s10 = ssub.s32 1, %s8
  %s11 = scalar_select 0, %s10, %s8
  $region1: #{tpu_custom_call.1} parent=0
    #allocation2 [shape = 'u8[16384]{0}', space=vmem, size = 0x4000, scoped, tag = 'input window, operand 0, single buffered']
    #allocation3 [shape = 's32[1]{0}', space=sflag, size = 0x4, scoped, tag = 'scoped memory for tpu_custom_call.1']
    #allocation4 [shape = 's32[1]{0}', space=sflag, size = 0x4, scoped, tag = 'scoped memory for tpu_custom_call.1']
    #allocation5 [shape = 'u8[524288]{0}', space=vmem, size = 0x80000, scoped, tag = 'input window, operand 1, single buffered']
    #allocation6 [shape = 's32[1]{0}', space=sflag, size = 0x4, scoped, tag = 'scoped memory for tpu_custom_call.1']
    #allocation7 [shape = 'u8[262144]{0}', space=vmem, size = 0x40000, scoped, tag = 'input window, operand 3, single buffered']
    #allocation8 [shape = 'u8[65536]{0}', space=vmem, size = 0x10000, scoped, tag = 'input window, operand 5, single buffered']
    #allocation9 [shape = 's32[1]{0}', space=sflag, size = 0x4, scoped, tag = 'scoped memory for tpu_custom_call.1']
    #allocation10 [shape = 'u8[4096]{0}', space=vmem, size = 0x1000, scoped, tag = 'output window, operand 0, single buffered']
    %12 = vsyncpa [#allocation3], 0
    %13 = vsyncpa [#allocation6], 0
    %14 = vsyncpa [#allocation9], 0
    %15 = vsyncpa [#allocation4], 0
    // Predicated region
    $region2: #{tpu_custom_call.1} parent=1 // pred_check
      _
    $region3: #{tpu_custom_call.1} parent=1 // pred_check_branch
      %17 = sbr.rel (0) target = $region5
    $region4: #{tpu_custom_call.1} parent=1 // pred_region
      %s19 = ssub.s32 512, 512
      %20 = vsyncadd [#allocation3], %s19
      %s22 = sshll.u32 [#allocation2], 4
      %s23 = int_to_ptr.vmem [resolvable:$true] %s22
      %25 = dma.hbm_to_vmem [thread:$0]  %s0, 512, %s23, [#allocation3]
    $region5: #{tpu_custom_call.1} parent=1 // pred_fallthru
      _
    // Predicated region
    $region6: #{tpu_custom_call.1} parent=1 // pred_check
      _
    $region7: #{tpu_custom_call.1} parent=1 // pred_check_branch
      %27 = sbr.rel (0) target = $region9
    $region8: #{tpu_custom_call.1} parent=1 // pred_region
      %s29 = ssub.s32 16384, 16384
      %30 = vsyncadd [#allocation6], %s29
      %s31 = sshll.u32 [#allocation5], 4
      %s32 = int_to_ptr.vmem [resolvable:$true] %s31
      %37 = dma.hbm_to_vmem [thread:$0]  %s1, 16384, %s32, [#allocation6], 256, 256, 16
    $region9: #{tpu_custom_call.1} parent=1 // pred_fallthru
      _
    // Predicated region
    $region10: #{tpu_custom_call.1} parent=1 // pred_check
      _
    $region11: #{tpu_custom_call.1} parent=1 // pred_check_branch
      %39 = sbr.rel (0) target = $region13
    $region12: #{tpu_custom_call.1} parent=1 // pred_region
      _
    $region13: #{tpu_custom_call.1} parent=1 // pred_fallthru
      _
    // Predicated region
    $region14: #{tpu_custom_call.1} parent=1 // pred_check
      _
    $region15: #{tpu_custom_call.1} parent=1 // pred_check_branch
      %41 = sbr.rel (0) target = $region17
    $region16: #{tpu_custom_call.1} parent=1 // pred_region
      %s43 = ssub.s32 8192, 8192
      %44 = vsyncadd [#allocation6], %s43
      %s45 = sshll.u32 [#allocation7], 4
      %s46 = int_to_ptr.vmem [resolvable:$true] %s45
      %51 = dma.hbm_to_vmem [thread:$0]  %s3, 8192, %s46, [#allocation6], 128, 128, 8
    $region17: #{tpu_custom_call.1} parent=1 // pred_fallthru
      _
    // Predicated region
    $region18: #{tpu_custom_call.1} parent=1 // pred_check
      _
    $region19: #{tpu_custom_call.1} parent=1 // pred_check_branch
      %53 = sbr.rel (0) target = $region21
    $region20: #{tpu_custom_call.1} parent=1 // pred_region
      _
    $region21: #{tpu_custom_call.1} parent=1 // pred_fallthru
      _
    // Predicated region
    $region22: #{tpu_custom_call.1} parent=1 // pred_check
      _
    $region23: #{tpu_custom_call.1} parent=1 // pred_check_branch
      %55 = sbr.rel (0) target = $region25
    $region24: #{tpu_custom_call.1} parent=1 // pred_region
      %s57 = ssub.s32 2048, 2048
      %58 = vsyncadd [#allocation9], %s57
      %s59 = sshll.u32 [#allocation8], 4
      %s60 = int_to_ptr.vmem [resolvable:$true] %s59
      %65 = dma.hbm_to_vmem [thread:$0]  %s5, 2048, %s60, [#allocation9], 64, 64, 4
    $region25: #{tpu_custom_call.1} parent=1 // pred_fallthru
      _
    // Predicated region
    $region26: #{tpu_custom_call.1} parent=1 // pred_check
      _
    $region27: #{tpu_custom_call.1} parent=1 // pred_check_branch
      %67 = sbr.rel (0) target = $region29
    $region28: #{tpu_custom_call.1} parent=1 // pred_region
      _
    $region29: #{tpu_custom_call.1} parent=1 // pred_fallthru
      _
    // Predicated region
    $region30: #{tpu_custom_call.1} parent=1 // pred_check
      _
    $region31: #{tpu_custom_call.1} parent=1 // pred_check_branch
      %69 = sbr.rel (0) target = $region33
    $region32: #{tpu_custom_call.1} parent=1 // pred_region
      %70 = dma.done [#allocation3], 512
    $region33: #{tpu_custom_call.1} parent=1 // pred_fallthru
      _
    // Predicated region
    $region34: #{tpu_custom_call.1} parent=1 // pred_check
      _
    $region35: #{tpu_custom_call.1} parent=1 // pred_check_branch
      %72 = sbr.rel (0) target = $region37
    $region36: #{tpu_custom_call.1} parent=1 // pred_region
      %73 = dma.done [#allocation6], 16384
    $region37: #{tpu_custom_call.1} parent=1 // pred_fallthru
      _
    // Predicated region
    $region38: #{tpu_custom_call.1} parent=1 // pred_check
      _
    $region39: #{tpu_custom_call.1} parent=1 // pred_check_branch
      %75 = sbr.rel (0) target = $region41
    $region40: #{tpu_custom_call.1} parent=1 // pred_region
      %76 = dma.done [#allocation6], 8192
    $region41: #{tpu_custom_call.1} parent=1 // pred_fallthru
      _
    // Predicated region
    $region42: #{tpu_custom_call.1} parent=1 // pred_check
      _
    $region43: #{tpu_custom_call.1} parent=1 // pred_check_branch
      %78 = sbr.rel (0) target = $region45
    $region44: #{tpu_custom_call.1} parent=1 // pred_region
      %79 = dma.done [#allocation9], 2048
    $region45: #{tpu_custom_call.1} parent=1 // pred_fallthru
      _
    %v81 = vld [vmem:[#allocation2] sm:$0xff]
    %v82 = vld [vmem:[#allocation2 + $0x8] sm:$0xff]
    %v83 = vld [vmem:[#allocation2 + $0x10] sm:$0xff]
    %v84 = vld [vmem:[#allocation2 + $0x18] sm:$0xff]
    %v85 = vpack.c.bf16 %v81, %v81
    %v86 = vpack.c.bf16 %v82, %v82
    %v87 = vpack.c.bf16 %v83, %v83
    %v88 = vpack.c.bf16 %v84, %v84
    %v89 = vld [vmem:[#allocation5] sm:$0xff]
    %v90 = vld [vmem:[#allocation5 + $0x8] sm:$0xff]
    %v91 = vld [vmem:[#allocation5 + $0x10] sm:$0xff]
    %v92 = vld [vmem:[#allocation5 + $0x18] sm:$0xff]
    %v93 = vld [vmem:[#allocation5 + $0x20] sm:$0xff]
    %v94 = vld [vmem:[#allocation5 + $0x28] sm:$0xff]
    %v95 = vld [vmem:[#allocation5 + $0x30] sm:$0xff]
    %v96 = vld [vmem:[#allocation5 + $0x38] sm:$0xff]
    %v97 = vld [vmem:[#allocation5 + $0x40] sm:$0xff]
    %v98 = vld [vmem:[#allocation5 + $0x48] sm:$0xff]
    %v99 = vld [vmem:[#allocation5 + $0x50] sm:$0xff]
    %v100 = vld [vmem:[#allocation5 + $0x58] sm:$0xff]
    %v101 = vld [vmem:[#allocation5 + $0x60] sm:$0xff]
    %v102 = vld [vmem:[#allocation5 + $0x68] sm:$0xff]
    %v103 = vld [vmem:[#allocation5 + $0x70] sm:$0xff]
    %v104 = vld [vmem:[#allocation5 + $0x78] sm:$0xff]
    %v105 = vld [vmem:[#allocation5 + $0x80] sm:$0xff]
    %v106 = vld [vmem:[#allocation5 + $0x88] sm:$0xff]
    %v107 = vld [vmem:[#allocation5 + $0x90] sm:$0xff]
    %v108 = vld [vmem:[#allocation5 + $0x98] sm:$0xff]
    %v109 = vld [vmem:[#allocation5 + $0xa0] sm:$0xff]
    %v110 = vld [vmem:[#allocation5 + $0xa8] sm:$0xff]
    %v111 = vld [vmem:[#allocation5 + $0xb0] sm:$0xff]
    %v112 = vld [vmem:[#allocation5 + $0xb8] sm:$0xff]
    %v113 = vld [vmem:[#allocation5 + $0xc0] sm:$0xff]
    %v114 = vld [vmem:[#allocation5 + $0xc8] sm:$0xff]
    %v115 = vld [vmem:[#allocation5 + $0xd0] sm:$0xff]
    %v116 = vld [vmem:[#allocation5 + $0xd8] sm:$0xff]
    %v117 = vld [vmem:[#allocation5 + $0xe0] sm:$0xff]
    %v118 = vld [vmem:[#allocation5 + $0xe8] sm:$0xff]
    %v119 = vld [vmem:[#allocation5 + $0xf0] sm:$0xff]
    %v120 = vld [vmem:[#allocation5 + $0xf8] sm:$0xff]
    %v121 = vld [vmem:[#allocation5 + $0x100] sm:$0xff]
    %v122 = vld [vmem:[#allocation5 + $0x108] sm:$0xff]
    %v123 = vld [vmem:[#allocation5 + $0x110] sm:$0xff]
    %v124 = vld [vmem:[#allocation5 + $0x118] sm:$0xff]
    %v125 = vld [vmem:[#allocation5 + $0x120] sm:$0xff]
    %v126 = vld [vmem:[#allocation5 + $0x128] sm:$0xff]
    %v127 = vld [vmem:[#allocation5 + $0x130] sm:$0xff]
    %v128 = vld [vmem:[#allocation5 + $0x138] sm:$0xff]
    %v129 = vld [vmem:[#allocation5 + $0x140] sm:$0xff]
    %v130 = vld [vmem:[#allocation5 + $0x148] sm:$0xff]
    %v131 = vld [vmem:[#allocation5 + $0x150] sm:$0xff]
    %v132 = vld [vmem:[#allocation5 + $0x158] sm:$0xff]
    %v133 = vld [vmem:[#allocation5 + $0x160] sm:$0xff]
    %v134 = vld [vmem:[#allocation5 + $0x168] sm:$0xff]
    %v135 = vld [vmem:[#allocation5 + $0x170] sm:$0xff]
    %v136 = vld [vmem:[#allocation5 + $0x178] sm:$0xff]
    %v137 = vld [vmem:[#allocation5 + $0x180] sm:$0xff]
    %v138 = vld [vmem:[#allocation5 + $0x188] sm:$0xff]
    %v139 = vld [vmem:[#allocation5 + $0x190] sm:$0xff]
    %v140 = vld [vmem:[#allocation5 + $0x198] sm:$0xff]
    %v141 = vld [vmem:[#allocation5 + $0x1a0] sm:$0xff]
    %v142 = vld [vmem:[#allocation5 + $0x1a8] sm:$0xff]
    %v143 = vld [vmem:[#allocation5 + $0x1b0] sm:$0xff]
    %v144 = vld [vmem:[#allocation5 + $0x1b8] sm:$0xff]
    %v145 = vld [vmem:[#allocation5 + $0x1c0] sm:$0xff]
    %v146 = vld [vmem:[#allocation5 + $0x1c8] sm:$0xff]
    %v147 = vld [vmem:[#allocation5 + $0x1d0] sm:$0xff]
    %v148 = vld [vmem:[#allocation5 + $0x1d8] sm:$0xff]
    %v149 = vld [vmem:[#allocation5 + $0x1e0] sm:$0xff]
    %v150 = vld [vmem:[#allocation5 + $0x1e8] sm:$0xff]
    %v151 = vld [vmem:[#allocation5 + $0x1f0] sm:$0xff]
    %v152 = vld [vmem:[#allocation5 + $0x1f8] sm:$0xff]
    %v153 = vld [vmem:[#allocation5 + $0x200] sm:$0xff]
    %v154 = vld [vmem:[#allocation5 + $0x208] sm:$0xff]
    %v155 = vld [vmem:[#allocation5 + $0x210] sm:$0xff]
    %v156 = vld [vmem:[#allocation5 + $0x218] sm:$0xff]
    %v157 = vld [vmem:[#allocation5 + $0x220] sm:$0xff]
    %v158 = vld [vmem:[#allocation5 + $0x228] sm:$0xff]
    %v159 = vld [vmem:[#allocation5 + $0x230] sm:$0xff]
    %v160 = vld [vmem:[#allocation5 + $0x238] sm:$0xff]
    %v161 = vld [vmem:[#allocation5 + $0x240] sm:$0xff]
    %v162 = vld [vmem:[#allocation5 + $0x248] sm:$0xff]
    %v163 = vld [vmem:[#allocation5 + $0x250] sm:$0xff]
    %v164 = vld [vmem:[#allocation5 + $0x258] sm:$0xff]
    %v165 = vld [vmem:[#allocation5 + $0x260] sm:$0xff]
    %v166 = vld [vmem:[#allocation5 + $0x268] sm:$0xff]
    %v167 = vld [vmem:[#allocation5 + $0x270] sm:$0xff]
    %v168 = vld [vmem:[#allocation5 + $0x278] sm:$0xff]
    %v169 = vld [vmem:[#allocation5 + $0x280] sm:$0xff]
    %v170 = vld [vmem:[#allocation5 + $0x288] sm:$0xff]
    %v171 = vld [vmem:[#allocation5 + $0x290] sm:$0xff]
    %v172 = vld [vmem:[#allocation5 + $0x298] sm:$0xff]
    %v173 = vld [vmem:[#allocation5 + $0x2a0] sm:$0xff]
    %v174 = vld [vmem:[#allocation5 + $0x2a8] sm:$0xff]
    %v175 = vld [vmem:[#allocation5 + $0x2b0] sm:$0xff]
    %v176 = vld [vmem:[#allocation5 + $0x2b8] sm:$0xff]
    %v177 = vld [vmem:[#allocation5 + $0x2c0] sm:$0xff]
    %v178 = vld [vmem:[#allocation5 + $0x2c8] sm:$0xff]
    %v179 = vld [vmem:[#allocation5 + $0x2d0] sm:$0xff]
    %v180 = vld [vmem:[#allocation5 + $0x2d8] sm:$0xff]
    %v181 = vld [vmem:[#allocation5 + $0x2e0] sm:$0xff]
    %v182 = vld [vmem:[#allocation5 + $0x2e8] sm:$0xff]
    %v183 = vld [vmem:[#allocation5 + $0x2f0] sm:$0xff]
    %v184 = vld [vmem:[#allocation5 + $0x2f8] sm:$0xff]
    %v185 = vld [vmem:[#allocation5 + $0x300] sm:$0xff]
    %v186 = vld [vmem:[#allocation5 + $0x308] sm:$0xff]
    %v187 = vld [vmem:[#allocation5 + $0x310] sm:$0xff]
    %v188 = vld [vmem:[#allocation5 + $0x318] sm:$0xff]
    %v189 = vld [vmem:[#allocation5 + $0x320] sm:$0xff]
    %v190 = vld [vmem:[#allocation5 + $0x328] sm:$0xff]
    %v191 = vld [vmem:[#allocation5 + $0x330] sm:$0xff]
    %v192 = vld [vmem:[#allocation5 + $0x338] sm:$0xff]
    %v193 = vld [vmem:[#allocation5 + $0x340] sm:$0xff]
    %v194 = vld [vmem:[#allocation5 + $0x348] sm:$0xff]
    %v195 = vld [vmem:[#allocation5 + $0x350] sm:$0xff]
    %v196 = vld [vmem:[#allocation5 + $0x358] sm:$0xff]
    %v197 = vld [vmem:[#allocation5 + $0x360] sm:$0xff]
    %v198 = vld [vmem:[#allocation5 + $0x368] sm:$0xff]
    %v199 = vld [vmem:[#allocation5 + $0x370] sm:$0xff]
    %v200 = vld [vmem:[#allocation5 + $0x378] sm:$0xff]
    %v201 = vld [vmem:[#allocation5 + $0x380] sm:$0xff]
    %v202 = vld [vmem:[#allocation5 + $0x388] sm:$0xff]
    %v203 = vld [vmem:[#allocation5 + $0x390] sm:$0xff]
    %v204 = vld [vmem:[#allocation5 + $0x398] sm:$0xff]
    %v205 = vld [vmem:[#allocation5 + $0x3a0] sm:$0xff]
    %v206 = vld [vmem:[#allocation5 + $0x3a8] sm:$0xff]
    %v207 = vld [vmem:[#allocation5 + $0x3b0] sm:$0xff]
    %v208 = vld [vmem:[#allocation5 + $0x3b8] sm:$0xff]
    %v209 = vld [vmem:[#allocation5 + $0x3c0] sm:$0xff]
    %v210 = vld [vmem:[#allocation5 + $0x3c8] sm:$0xff]
    %v211 = vld [vmem:[#allocation5 + $0x3d0] sm:$0xff]
    %v212 = vld [vmem:[#allocation5 + $0x3d8] sm:$0xff]
    %v213 = vld [vmem:[#allocation5 + $0x3e0] sm:$0xff]
    %v214 = vld [vmem:[#allocation5 + $0x3e8] sm:$0xff]
    %v215 = vld [vmem:[#allocation5 + $0x3f0] sm:$0xff]
    %v216 = vld [vmem:[#allocation5 + $0x3f8] sm:$0xff]
    %v217 = vld [vmem:[%s2] sm:$0xf]
    %v219 = vlaneseq
    %v220 = vshrl.u32 %v219, 7
    %v221 = vsub.s32 0, %v220
    %v222 = vrot.slane %v217, %v221
    %v223 = vlaneseq
    %v224 = vshrl.u32 %v223, 7
    %v225 = vsub.s32 1, %v224
    %v226 = vrot.slane %v217, %v225
    %v227 = vlaneseq
    %v228 = vshrl.u32 %v227, 7
    %v229 = vsub.s32 2, %v228
    %v230 = vrot.slane %v217, %v229
    %v231 = vlaneseq
    %v232 = vshrl.u32 %v231, 7
    %v233 = vsub.s32 3, %v232
    %v234 = vrot.slane %v217, %v233
    %v367 = vunpack.c.l.b16 %v89
    %v368 = vunpack.c.h.b16 %v89
    %v369 = vunpack.c.l.b16 %v90
    %v370 = vunpack.c.h.b16 %v90
    %v371 = vunpack.c.l.b16 %v91
    %v372 = vunpack.c.h.b16 %v91
    %v373 = vunpack.c.l.b16 %v92
    %v374 = vunpack.c.h.b16 %v92
    %v375 = vunpack.c.l.b16 %v93
    %v376 = vunpack.c.h.b16 %v93
    %v377 = vunpack.c.l.b16 %v94
    %v378 = vunpack.c.h.b16 %v94
    %v379 = vunpack.c.l.b16 %v95
    %v380 = vunpack.c.h.b16 %v95
    %v381 = vunpack.c.l.b16 %v96
    %v382 = vunpack.c.h.b16 %v96
    %v383 = vunpack.c.l.b16 %v97
    %v384 = vunpack.c.h.b16 %v97
    %v385 = vunpack.c.l.b16 %v98
    %v386 = vunpack.c.h.b16 %v98
    %v387 = vunpack.c.l.b16 %v99
    %v388 = vunpack.c.h.b16 %v99
    %v389 = vunpack.c.l.b16 %v100
    %v390 = vunpack.c.h.b16 %v100
    %v391 = vunpack.c.l.b16 %v101
    %v392 = vunpack.c.h.b16 %v101
    %v393 = vunpack.c.l.b16 %v102
    %v394 = vunpack.c.h.b16 %v102
    %v395 = vunpack.c.l.b16 %v103
    %v396 = vunpack.c.h.b16 %v103
    %v397 = vunpack.c.l.b16 %v104
    %v398 = vunpack.c.h.b16 %v104
    %v399 = vunpack.c.l.b16 %v105
    %v400 = vunpack.c.h.b16 %v105
    %v401 = vunpack.c.l.b16 %v106
    %v402 = vunpack.c.h.b16 %v106
    %v403 = vunpack.c.l.b16 %v107
    %v404 = vunpack.c.h.b16 %v107
    %v405 = vunpack.c.l.b16 %v108
    %v406 = vunpack.c.h.b16 %v108
    %v407 = vunpack.c.l.b16 %v109
    %v408 = vunpack.c.h.b16 %v109
    %v409 = vunpack.c.l.b16 %v110
    %v410 = vunpack.c.h.b16 %v110
    %v411 = vunpack.c.l.b16 %v111
    %v412 = vunpack.c.h.b16 %v111
    %v413 = vunpack.c.l.b16 %v112
    %v414 = vunpack.c.h.b16 %v112
    %v415 = vunpack.c.l.b16 %v113
    %v416 = vunpack.c.h.b16 %v113
    %v417 = vunpack.c.l.b16 %v114
    %v418 = vunpack.c.h.b16 %v114
    %v419 = vunpack.c.l.b16 %v115
    %v420 = vunpack.c.h.b16 %v115
    %v421 = vunpack.c.l.b16 %v116
    %v422 = vunpack.c.h.b16 %v116
    %v423 = vunpack.c.l.b16 %v117
    %v424 = vunpack.c.h.b16 %v117
    %v425 = vunpack.c.l.b16 %v118
    %v426 = vunpack.c.h.b16 %v118
    %v427 = vunpack.c.l.b16 %v119
    %v428 = vunpack.c.h.b16 %v119
    %v429 = vunpack.c.l.b16 %v120
    %v430 = vunpack.c.h.b16 %v120
    %v431 = vunpack.c.l.b16 %v121
    %v432 = vunpack.c.h.b16 %v121
    %v433 = vunpack.c.l.b16 %v122
    %v434 = vunpack.c.h.b16 %v122
    %v435 = vunpack.c.l.b16 %v123
    %v436 = vunpack.c.h.b16 %v123
    %v437 = vunpack.c.l.b16 %v124
    %v438 = vunpack.c.h.b16 %v124
    %v439 = vunpack.c.l.b16 %v125
    %v440 = vunpack.c.h.b16 %v125
    %v441 = vunpack.c.l.b16 %v126
    %v442 = vunpack.c.h.b16 %v126
    %v443 = vunpack.c.l.b16 %v127
    %v444 = vunpack.c.h.b16 %v127
    %v445 = vunpack.c.l.b16 %v128
    %v446 = vunpack.c.h.b16 %v128
    %v447 = vunpack.c.l.b16 %v129
    %v448 = vunpack.c.h.b16 %v129
    %v449 = vunpack.c.l.b16 %v130
    %v450 = vunpack.c.h.b16 %v130
    %v451 = vunpack.c.l.b16 %v131
    %v452 = vunpack.c.h.b16 %v131
    %v453 = vunpack.c.l.b16 %v132
    %v454 = vunpack.c.h.b16 %v132
    %v455 = vunpack.c.l.b16 %v133
    %v456 = vunpack.c.h.b16 %v133
    %v457 = vunpack.c.l.b16 %v134
    %v458 = vunpack.c.h.b16 %v134
    %v459 = vunpack.c.l.b16 %v135
    %v460 = vunpack.c.h.b16 %v135
    %v461 = vunpack.c.l.b16 %v136
    %v462 = vunpack.c.h.b16 %v136
    %v463 = vunpack.c.l.b16 %v137
    %v464 = vunpack.c.h.b16 %v137
    %v465 = vunpack.c.l.b16 %v138
    %v466 = vunpack.c.h.b16 %v138
    %v467 = vunpack.c.l.b16 %v139
    %v468 = vunpack.c.h.b16 %v139
    %v469 = vunpack.c.l.b16 %v140
    %v470 = vunpack.c.h.b16 %v140
    %v471 = vunpack.c.l.b16 %v141
    %v472 = vunpack.c.h.b16 %v141
    %v473 = vunpack.c.l.b16 %v142
    %v474 = vunpack.c.h.b16 %v142
    %v475 = vunpack.c.l.b16 %v143
    %v476 = vunpack.c.h.b16 %v143
    %v477 = vunpack.c.l.b16 %v144
    %v478 = vunpack.c.h.b16 %v144
    %v479 = vunpack.c.l.b16 %v145
    %v480 = vunpack.c.h.b16 %v145
    %v481 = vunpack.c.l.b16 %v146
    %v482 = vunpack.c.h.b16 %v146
    %v483 = vunpack.c.l.b16 %v147
    %v484 = vunpack.c.h.b16 %v147
    %v485 = vunpack.c.l.b16 %v148
    %v486 = vunpack.c.h.b16 %v148
    %v487 = vunpack.c.l.b16 %v149
    %v488 = vunpack.c.h.b16 %v149
    %v489 = vunpack.c.l.b16 %v150
    %v490 = vunpack.c.h.b16 %v150
    %v491 = vunpack.c.l.b16 %v151
    %v492 = vunpack.c.h.b16 %v151
    %v493 = vunpack.c.l.b16 %v152
    %v494 = vunpack.c.h.b16 %v152
    %v495 = vunpack.c.l.b16 %v153
    %v496 = vunpack.c.h.b16 %v153
    %v497 = vunpack.c.l.b16 %v154
    %v498 = vunpack.c.h.b16 %v154
    %v499 = vunpack.c.l.b16 %v155
    %v500 = vunpack.c.h.b16 %v155
    %v501 = vunpack.c.l.b16 %v156
    %v502 = vunpack.c.h.b16 %v156
    %v503 = vunpack.c.l.b16 %v157
    %v504 = vunpack.c.h.b16 %v157
    %v505 = vunpack.c.l.b16 %v158
    %v506 = vunpack.c.h.b16 %v158
    %v507 = vunpack.c.l.b16 %v159
    %v508 = vunpack.c.h.b16 %v159
    %v509 = vunpack.c.l.b16 %v160
    %v510 = vunpack.c.h.b16 %v160
    %v511 = vunpack.c.l.b16 %v161
    %v512 = vunpack.c.h.b16 %v161
    %v513 = vunpack.c.l.b16 %v162
    %v514 = vunpack.c.h.b16 %v162
    %v515 = vunpack.c.l.b16 %v163
    %v516 = vunpack.c.h.b16 %v163
    %v517 = vunpack.c.l.b16 %v164
    %v518 = vunpack.c.h.b16 %v164
    %v519 = vunpack.c.l.b16 %v165
    %v520 = vunpack.c.h.b16 %v165
    %v521 = vunpack.c.l.b16 %v166
    %v522 = vunpack.c.h.b16 %v166
    %v523 = vunpack.c.l.b16 %v167
    %v524 = vunpack.c.h.b16 %v167
    %v525 = vunpack.c.l.b16 %v168
    %v526 = vunpack.c.h.b16 %v168
    %v527 = vunpack.c.l.b16 %v169
    %v528 = vunpack.c.h.b16 %v169
    %v529 = vunpack.c.l.b16 %v170
    %v530 = vunpack.c.h.b16 %v170
    %v531 = vunpack.c.l.b16 %v171
    %v532 = vunpack.c.h.b16 %v171
    %v533 = vunpack.c.l.b16 %v172
    %v534 = vunpack.c.h.b16 %v172
    %v535 = vunpack.c.l.b16 %v173
    %v536 = vunpack.c.h.b16 %v173
    %v537 = vunpack.c.l.b16 %v174
    %v538 = vunpack.c.h.b16 %v174
    %v539 = vunpack.c.l.b16 %v175
    %v540 = vunpack.c.h.b16 %v175
    %v541 = vunpack.c.l.b16 %v176
    %v542 = vunpack.c.h.b16 %v176
    %v543 = vunpack.c.l.b16 %v177
    %v544 = vunpack.c.h.b16 %v177
    %v545 = vunpack.c.l.b16 %v178
    %v546 = vunpack.c.h.b16 %v178
    %v547 = vunpack.c.l.b16 %v179
    %v548 = vunpack.c.h.b16 %v179
    %v549 = vunpack.c.l.b16 %v180
    %v550 = vunpack.c.h.b16 %v180
    %v551 = vunpack.c.l.b16 %v181
    %v552 = vunpack.c.h.b16 %v181
    %v553 = vunpack.c.l.b16 %v182
    %v554 = vunpack.c.h.b16 %v182
    %v555 = vunpack.c.l.b16 %v183
    %v556 = vunpack.c.h.b16 %v183
    %v557 = vunpack.c.l.b16 %v184
    %v558 = vunpack.c.h.b16 %v184
    %v559 = vunpack.c.l.b16 %v185
    %v560 = vunpack.c.h.b16 %v185
    %v561 = vunpack.c.l.b16 %v186
    %v562 = vunpack.c.h.b16 %v186
    %v563 = vunpack.c.l.b16 %v187
    %v564 = vunpack.c.h.b16 %v187
    %v565 = vunpack.c.l.b16 %v188
    %v566 = vunpack.c.h.b16 %v188
    %v567 = vunpack.c.l.b16 %v189
    %v568 = vunpack.c.h.b16 %v189
    %v569 = vunpack.c.l.b16 %v190
    %v570 = vunpack.c.h.b16 %v190
    %v571 = vunpack.c.l.b16 %v191
    %v572 = vunpack.c.h.b16 %v191
    %v573 = vunpack.c.l.b16 %v192
    %v574 = vunpack.c.h.b16 %v192
    %v575 = vunpack.c.l.b16 %v193
    %v576 = vunpack.c.h.b16 %v193
    %v577 = vunpack.c.l.b16 %v194
    %v578 = vunpack.c.h.b16 %v194
    %v579 = vunpack.c.l.b16 %v195
    %v580 = vunpack.c.h.b16 %v195
    %v581 = vunpack.c.l.b16 %v196
    %v582 = vunpack.c.h.b16 %v196
    %v583 = vunpack.c.l.b16 %v197
    %v584 = vunpack.c.h.b16 %v197
    %v585 = vunpack.c.l.b16 %v198
    %v586 = vunpack.c.h.b16 %v198
    %v587 = vunpack.c.l.b16 %v199
    %v588 = vunpack.c.h.b16 %v199
    %v589 = vunpack.c.l.b16 %v200
    %v590 = vunpack.c.h.b16 %v200
    %v591 = vunpack.c.l.b16 %v201
    %v592 = vunpack.c.h.b16 %v201
    %v593 = vunpack.c.l.b16 %v202
    %v594 = vunpack.c.h.b16 %v202
    %v595 = vunpack.c.l.b16 %v203
    %v596 = vunpack.c.h.b16 %v203
    %v597 = vunpack.c.l.b16 %v204
    %v598 = vunpack.c.h.b16 %v204
    %v599 = vunpack.c.l.b16 %v205
    %v600 = vunpack.c.h.b16 %v205
    %v601 = vunpack.c.l.b16 %v206
    %v602 = vunpack.c.h.b16 %v206
    %v603 = vunpack.c.l.b16 %v207
    %v604 = vunpack.c.h.b16 %v207
    %v605 = vunpack.c.l.b16 %v208
    %v606 = vunpack.c.h.b16 %v208
    %v607 = vunpack.c.l.b16 %v209
    %v608 = vunpack.c.h.b16 %v209
    %v609 = vunpack.c.l.b16 %v210
    %v610 = vunpack.c.h.b16 %v210
    %v611 = vunpack.c.l.b16 %v211
    %v612 = vunpack.c.h.b16 %v211
    %v613 = vunpack.c.l.b16 %v212
    %v614 = vunpack.c.h.b16 %v212
    %v615 = vunpack.c.l.b16 %v213
    %v616 = vunpack.c.h.b16 %v213
    %v617 = vunpack.c.l.b16 %v214
    %v618 = vunpack.c.h.b16 %v214
    %v619 = vunpack.c.l.b16 %v215
    %v620 = vunpack.c.h.b16 %v215
    %v621 = vunpack.c.l.b16 %v216
    %v622 = vunpack.c.h.b16 %v216
    %v623 = vpack.c.b16 %v371, %v367
    %v624 = vpack.c.b16 %v372, %v368
    %v625 = vpack.c.b16 %v373, %v369
    %v626 = vpack.c.b16 %v374, %v370
    %v627 = vpack.c.b16 %v379, %v375
    %v628 = vpack.c.b16 %v380, %v376
    %v629 = vpack.c.b16 %v381, %v377
    %v630 = vpack.c.b16 %v382, %v378
    %v631 = vpack.c.b16 %v387, %v383
    %v632 = vpack.c.b16 %v388, %v384
    %v633 = vpack.c.b16 %v389, %v385
    %v634 = vpack.c.b16 %v390, %v386
    %v635 = vpack.c.b16 %v395, %v391
    %v636 = vpack.c.b16 %v396, %v392
    %v637 = vpack.c.b16 %v397, %v393
    %v638 = vpack.c.b16 %v398, %v394
    %v639 = vpack.c.b16 %v403, %v399
    %v640 = vpack.c.b16 %v404, %v400
    %v641 = vpack.c.b16 %v405, %v401
    %v642 = vpack.c.b16 %v406, %v402
    %v643 = vpack.c.b16 %v411, %v407
    %v644 = vpack.c.b16 %v412, %v408
    %v645 = vpack.c.b16 %v413, %v409
    %v646 = vpack.c.b16 %v414, %v410
    %v647 = vpack.c.b16 %v419, %v415
    %v648 = vpack.c.b16 %v420, %v416
    %v649 = vpack.c.b16 %v421, %v417
    %v650 = vpack.c.b16 %v422, %v418
    %v651 = vpack.c.b16 %v427, %v423
    %v652 = vpack.c.b16 %v428, %v424
    %v653 = vpack.c.b16 %v429, %v425
    %v654 = vpack.c.b16 %v430, %v426
    %v655 = vpack.c.b16 %v435, %v431
    %v656 = vpack.c.b16 %v436, %v432
    %v657 = vpack.c.b16 %v437, %v433
    %v658 = vpack.c.b16 %v438, %v434
    %v659 = vpack.c.b16 %v443, %v439
    %v660 = vpack.c.b16 %v444, %v440
    %v661 = vpack.c.b16 %v445, %v441
    %v662 = vpack.c.b16 %v446, %v442
    %v663 = vpack.c.b16 %v451, %v447
    %v664 = vpack.c.b16 %v452, %v448
    %v665 = vpack.c.b16 %v453, %v449
    %v666 = vpack.c.b16 %v454, %v450
    %v667 = vpack.c.b16 %v459, %v455
    %v668 = vpack.c.b16 %v460, %v456
    %v669 = vpack.c.b16 %v461, %v457
    %v670 = vpack.c.b16 %v462, %v458
    %v671 = vpack.c.b16 %v467, %v463
    %v672 = vpack.c.b16 %v468, %v464
    %v673 = vpack.c.b16 %v469, %v465
    %v674 = vpack.c.b16 %v470, %v466
    %v675 = vpack.c.b16 %v475, %v471
    %v676 = vpack.c.b16 %v476, %v472
    %v677 = vpack.c.b16 %v477, %v473
    %v678 = vpack.c.b16 %v478, %v474
    %v679 = vpack.c.b16 %v483, %v479
    %v680 = vpack.c.b16 %v484, %v480
    %v681 = vpack.c.b16 %v485, %v481
    %v682 = vpack.c.b16 %v486, %v482
    %v683 = vpack.c.b16 %v491, %v487
    %v684 = vpack.c.b16 %v492, %v488
    %v685 = vpack.c.b16 %v493, %v489
    %v686 = vpack.c.b16 %v494, %v490
    %v687 = vpack.c.b16 %v499, %v495
    %v688 = vpack.c.b16 %v500, %v496
    %v689 = vpack.c.b16 %v501, %v497
    %v690 = vpack.c.b16 %v502, %v498
    %v691 = vpack.c.b16 %v507, %v503
    %v692 = vpack.c.b16 %v508, %v504
    %v693 = vpack.c.b16 %v509, %v505
    %v694 = vpack.c.b16 %v510, %v506
    %v695 = vpack.c.b16 %v515, %v511
    %v696 = vpack.c.b16 %v516, %v512
    %v697 = vpack.c.b16 %v517, %v513
    %v698 = vpack.c.b16 %v518, %v514
    %v699 = vpack.c.b16 %v523, %v519
    %v700 = vpack.c.b16 %v524, %v520
    %v701 = vpack.c.b16 %v525, %v521
    %v702 = vpack.c.b16 %v526, %v522
    %v703 = vpack.c.b16 %v531, %v527
    %v704 = vpack.c.b16 %v532, %v528
    %v705 = vpack.c.b16 %v533, %v529
    %v706 = vpack.c.b16 %v534, %v530
    %v707 = vpack.c.b16 %v539, %v535
    %v708 = vpack.c.b16 %v540, %v536
    %v709 = vpack.c.b16 %v541, %v537
    %v710 = vpack.c.b16 %v542, %v538
    %v711 = vpack.c.b16 %v547, %v543
    %v712 = vpack.c.b16 %v548, %v544
    %v713 = vpack.c.b16 %v549, %v545
    %v714 = vpack.c.b16 %v550, %v546
    %v715 = vpack.c.b16 %v555, %v551
    %v716 = vpack.c.b16 %v556, %v552
    %v717 = vpack.c.b16 %v557, %v553
    %v718 = vpack.c.b16 %v558, %v554
    %v719 = vpack.c.b16 %v563, %v559
    %v720 = vpack.c.b16 %v564, %v560
    %v721 = vpack.c.b16 %v565, %v561
    %v722 = vpack.c.b16 %v566, %v562
    %v723 = vpack.c.b16 %v571, %v567
    %v724 = vpack.c.b16 %v572, %v568
    %v725 = vpack.c.b16 %v573, %v569
    %v726 = vpack.c.b16 %v574, %v570
    %v727 = vpack.c.b16 %v579, %v575
    %v728 = vpack.c.b16 %v580, %v576
    %v729 = vpack.c.b16 %v581, %v577
    %v730 = vpack.c.b16 %v582, %v578
    %v731 = vpack.c.b16 %v587, %v583
    %v732 = vpack.c.b16 %v588, %v584
    %v733 = vpack.c.b16 %v589, %v585
    %v734 = vpack.c.b16 %v590, %v586
    %v735 = vpack.c.b16 %v595, %v591
    %v736 = vpack.c.b16 %v596, %v592
    %v737 = vpack.c.b16 %v597, %v593
    %v738 = vpack.c.b16 %v598, %v594
    %v739 = vpack.c.b16 %v603, %v599
    %v740 = vpack.c.b16 %v604, %v600
    %v741 = vpack.c.b16 %v605, %v601
    %v742 = vpack.c.b16 %v606, %v602
    %v743 = vpack.c.b16 %v611, %v607
    %v744 = vpack.c.b16 %v612, %v608
    %v745 = vpack.c.b16 %v613, %v609
    %v746 = vpack.c.b16 %v614, %v610
    %v747 = vpack.c.b16 %v619, %v615
    %v748 = vpack.c.b16 %v620, %v616
    %v749 = vpack.c.b16 %v621, %v617
    %v750 = vpack.c.b16 %v622, %v618
    %879 = vmatprep.subr.bf16.mxu0 %v624
    %880 = vmatpush1.bf16.msra.mxu0 %v623
    %881 = vmatprep.subr.bf16.mxu0 %v628
    %882 = vmatpush1.bf16.msra.mxu0 %v627
    %883 = vmatprep.subr.bf16.mxu0 %v632
    %884 = vmatpush1.bf16.msra.mxu0 %v631
    %885 = vmatprep.subr.bf16.mxu0 %v636
    %886 = vmatpush1.bf16.msra.mxu0 %v635
    %887 = vmatprep.subr.bf16.mxu0 %v640
    %888 = vmatpush1.bf16.msra.mxu0 %v639
    %889 = vmatprep.subr.bf16.mxu0 %v644
    %890 = vmatpush1.bf16.msra.mxu0 %v643
    %891 = vmatprep.subr.bf16.mxu0 %v648
    %892 = vmatpush1.bf16.msra.mxu0 %v647
    %893 = vmatprep.subr.bf16.mxu0 %v652
    %894 = vmatpush1.bf16.msra.mxu0 %v651
    %895 = vmatprep.subr.bf16.mxu0 %v656
    %896 = vmatpush1.bf16.msra.mxu0 %v655
    %897 = vmatprep.subr.bf16.mxu0 %v660
    %898 = vmatpush1.bf16.msra.mxu0 %v659
    %899 = vmatprep.subr.bf16.mxu0 %v664
    %900 = vmatpush1.bf16.msra.mxu0 %v663
    %901 = vmatprep.subr.bf16.mxu0 %v668
    %902 = vmatpush1.bf16.msra.mxu0 %v667
    %903 = vmatprep.subr.bf16.mxu0 %v672
    %904 = vmatpush1.bf16.msra.mxu0 %v671
    %905 = vmatprep.subr.bf16.mxu0 %v676
    %906 = vmatpush1.bf16.msra.mxu0 %v675
    %907 = vmatprep.subr.bf16.mxu0 %v680
    %908 = vmatpush1.bf16.msra.mxu0 %v679
    %909 = vmatprep.subr.bf16.mxu0 %v684
    %910 = vmatpush1.bf16.msra.mxu0 %v683
    %911 = vmatprep.mubr.bf16.mxu0 %v86
    %912 = vmatmul.mubr.bf16.gmra.mrb[0].mxu0 %v85
    %v913 = vpop.f32.mrb[0].mxu0
    %v914 = vadd.f32 %v222, %v913
    %v915 = vpop.f32.mrb[0].mxu0
    %v916 = vadd.f32 %v226, %v915
    %v917 = vpop.f32.mrb[0].mxu0
    %v918 = vpop.f32.mrb[0].mxu0
    %919 = vdwg.mxu0
    %920 = vmatprep.subr.bf16.mxu0 %v688
    %921 = vmatpush1.bf16.msra.mxu0 %v687
    %922 = vmatprep.subr.bf16.mxu0 %v692
    %923 = vmatpush1.bf16.msra.mxu0 %v691
    %924 = vmatprep.subr.bf16.mxu0 %v696
    %925 = vmatpush1.bf16.msra.mxu0 %v695
    %926 = vmatprep.subr.bf16.mxu0 %v700
    %927 = vmatpush1.bf16.msra.mxu0 %v699
    %928 = vmatprep.subr.bf16.mxu0 %v704
    %929 = vmatpush1.bf16.msra.mxu0 %v703
    %930 = vmatprep.subr.bf16.mxu0 %v708
    %931 = vmatpush1.bf16.msra.mxu0 %v707
    %932 = vmatprep.subr.bf16.mxu0 %v712
    %933 = vmatpush1.bf16.msra.mxu0 %v711
    %934 = vmatprep.subr.bf16.mxu0 %v716
    %935 = vmatpush1.bf16.msra.mxu0 %v715
    %936 = vmatprep.subr.bf16.mxu0 %v720
    %937 = vmatpush1.bf16.msra.mxu0 %v719
    %938 = vmatprep.subr.bf16.mxu0 %v724
    %939 = vmatpush1.bf16.msra.mxu0 %v723
    %940 = vmatprep.subr.bf16.mxu0 %v728
    %941 = vmatpush1.bf16.msra.mxu0 %v727
    %942 = vmatprep.subr.bf16.mxu0 %v732
    %943 = vmatpush1.bf16.msra.mxu0 %v731
    %944 = vmatprep.subr.bf16.mxu0 %v736
    %945 = vmatpush1.bf16.msra.mxu0 %v735
    %946 = vmatprep.subr.bf16.mxu0 %v740
    %947 = vmatpush1.bf16.msra.mxu0 %v739
    %948 = vmatprep.subr.bf16.mxu0 %v744
    %949 = vmatpush1.bf16.msra.mxu0 %v743
    %950 = vmatprep.subr.bf16.mxu0 %v748
    %951 = vmatpush1.bf16.msra.mxu0 %v747
    %952 = vmatprep.mubr.bf16.mxu0 %v88
    %953 = vmatmul.mubr.bf16.gmra.mrb[0].mxu0 %v87
    %v954 = vpop.f32.mrb[0].mxu0
    %v955 = vadd.f32 %v914, %v954
    %v956 = vpop.f32.mrb[0].mxu0
    %v957 = vadd.f32 %v916, %v956
    %v958 = vpop.f32.mrb[0].mxu0
    %v959 = vpop.f32.mrb[0].mxu0
    %960 = vdwg.mxu0
    %961 = vmatprep.subr.bf16.mxu0 %v626
    %962 = vmatpush1.bf16.msra.mxu0 %v625
    %963 = vmatprep.subr.bf16.mxu0 %v630
    %964 = vmatpush1.bf16.msra.mxu0 %v629
    %965 = vmatprep.subr.bf16.mxu0 %v634
    %966 = vmatpush1.bf16.msra.mxu0 %v633
    %967 = vmatprep.subr.bf16.mxu0 %v638
    %968 = vmatpush1.bf16.msra.mxu0 %v637
    %969 = vmatprep.subr.bf16.mxu0 %v642
    %970 = vmatpush1.bf16.msra.mxu0 %v641
    %971 = vmatprep.subr.bf16.mxu0 %v646
    %972 = vmatpush1.bf16.msra.mxu0 %v645
    %973 = vmatprep.subr.bf16.mxu0 %v650
    %974 = vmatpush1.bf16.msra.mxu0 %v649
    %975 = vmatprep.subr.bf16.mxu0 %v654
    %976 = vmatpush1.bf16.msra.mxu0 %v653
    %977 = vmatprep.subr.bf16.mxu0 %v658
    %978 = vmatpush1.bf16.msra.mxu0 %v657
    %979 = vmatprep.subr.bf16.mxu0 %v662
    %980 = vmatpush1.bf16.msra.mxu0 %v661
    %981 = vmatprep.subr.bf16.mxu0 %v666
    %982 = vmatpush1.bf16.msra.mxu0 %v665
    %983 = vmatprep.subr.bf16.mxu0 %v670
    %984 = vmatpush1.bf16.msra.mxu0 %v669
    %985 = vmatprep.subr.bf16.mxu0 %v674
    %986 = vmatpush1.bf16.msra.mxu0 %v673
    %987 = vmatprep.subr.bf16.mxu0 %v678
    %988 = vmatpush1.bf16.msra.mxu0 %v677
    %989 = vmatprep.subr.bf16.mxu0 %v682
    %990 = vmatpush1.bf16.msra.mxu0 %v681
    %991 = vmatprep.subr.bf16.mxu0 %v686
    %992 = vmatpush1.bf16.msra.mxu0 %v685
    %993 = vmatprep.mubr.bf16.mxu0 %v86
    %994 = vmatmul.mubr.bf16.gmra.mrb[0].mxu0 %v85
    %v995 = vpop.f32.mrb[0].mxu0
    %v996 = vadd.f32 %v230, %v995
    %v997 = vpop.f32.mrb[0].mxu0
    %v998 = vadd.f32 %v234, %v997
    %v999 = vpop.f32.mrb[0].mxu0
    %v1000 = vpop.f32.mrb[0].mxu0
    %1001 = vdwg.mxu0
    %1002 = vmatprep.subr.bf16.mxu0 %v690
    %1003 = vmatpush1.bf16.msra.mxu0 %v689
    %1004 = vmatprep.subr.bf16.mxu0 %v694
    %1005 = vmatpush1.bf16.msra.mxu0 %v693
    %1006 = vmatprep.subr.bf16.mxu0 %v698
    %1007 = vmatpush1.bf16.msra.mxu0 %v697
    %1008 = vmatprep.subr.bf16.mxu0 %v702
    %1009 = vmatpush1.bf16.msra.mxu0 %v701
    %1010 = vmatprep.subr.bf16.mxu0 %v706
    %1011 = vmatpush1.bf16.msra.mxu0 %v705
    %1012 = vmatprep.subr.bf16.mxu0 %v710
    %1013 = vmatpush1.bf16.msra.mxu0 %v709
    %1014 = vmatprep.subr.bf16.mxu0 %v714
    %1015 = vmatpush1.bf16.msra.mxu0 %v713
    %1016 = vmatprep.subr.bf16.mxu0 %v718
    %1017 = vmatpush1.bf16.msra.mxu0 %v717
    %1018 = vmatprep.subr.bf16.mxu0 %v722
    %1019 = vmatpush1.bf16.msra.mxu0 %v721
    %1020 = vmatprep.subr.bf16.mxu0 %v726
    %1021 = vmatpush1.bf16.msra.mxu0 %v725
    %1022 = vmatprep.subr.bf16.mxu0 %v730
    %1023 = vmatpush1.bf16.msra.mxu0 %v729
    %1024 = vmatprep.subr.bf16.mxu0 %v734
    %1025 = vmatpush1.bf16.msra.mxu0 %v733
    %1026 = vmatprep.subr.bf16.mxu0 %v738
    %1027 = vmatpush1.bf16.msra.mxu0 %v737
    %1028 = vmatprep.subr.bf16.mxu0 %v742
    %1029 = vmatpush1.bf16.msra.mxu0 %v741
    %1030 = vmatprep.subr.bf16.mxu0 %v746
    %1031 = vmatpush1.bf16.msra.mxu0 %v745
    %1032 = vmatprep.subr.bf16.mxu0 %v750
    %1033 = vmatpush1.bf16.msra.mxu0 %v749
    %1034 = vmatprep.mubr.bf16.mxu0 %v88
    %1035 = vmatmul.mubr.bf16.gmra.mrb[0].mxu0 %v87
    %v1036 = vpop.f32.mrb[0].mxu0
    %v1037 = vadd.f32 %v996, %v1036
    %v1038 = vpop.f32.mrb[0].mxu0
    %v1039 = vadd.f32 %v998, %v1038
    %v1040 = vpop.f32.mrb[0].mxu0
    %v1041 = vpop.f32.mrb[0].mxu0
    %1042 = vdwg.mxu0
    %v1043 = vmax.f32 %v955, 0.0
    %v1044 = vmax.f32 %v957, 0.0
    %v1045 = vmax.f32 %v1037, 0.0
    %v1046 = vmax.f32 %v1039, 0.0
    %v1047 = vpack.c.bf16 %v1043, %v1043
    %v1048 = vpack.c.bf16 %v1044, %v1044
    %v1049 = vpack.c.bf16 %v1045, %v1045
    %v1050 = vpack.c.bf16 %v1046, %v1046
    %v1051 = vld [vmem:[#allocation7] sm:$0xff]
    %v1052 = vld [vmem:[#allocation7 + $0x8] sm:$0xff]
    %v1053 = vld [vmem:[#allocation7 + $0x10] sm:$0xff]
    %v1054 = vld [vmem:[#allocation7 + $0x18] sm:$0xff]
    %v1055 = vld [vmem:[#allocation7 + $0x20] sm:$0xff]
    %v1056 = vld [vmem:[#allocation7 + $0x28] sm:$0xff]
    %v1057 = vld [vmem:[#allocation7 + $0x30] sm:$0xff]
    %v1058 = vld [vmem:[#allocation7 + $0x38] sm:$0xff]
    %v1059 = vld [vmem:[#allocation7 + $0x40] sm:$0xff]
    %v1060 = vld [vmem:[#allocation7 + $0x48] sm:$0xff]
    %v1061 = vld [vmem:[#allocation7 + $0x50] sm:$0xff]
    %v1062 = vld [vmem:[#allocation7 + $0x58] sm:$0xff]
    %v1063 = vld [vmem:[#allocation7 + $0x60] sm:$0xff]
    %v1064 = vld [vmem:[#allocation7 + $0x68] sm:$0xff]
    %v1065 = vld [vmem:[#allocation7 + $0x70] sm:$0xff]
    %v1066 = vld [vmem:[#allocation7 + $0x78] sm:$0xff]
    %v1067 = vld [vmem:[#allocation7 + $0x80] sm:$0xff]
    %v1068 = vld [vmem:[#allocation7 + $0x88] sm:$0xff]
    %v1069 = vld [vmem:[#allocation7 + $0x90] sm:$0xff]
    %v1070 = vld [vmem:[#allocation7 + $0x98] sm:$0xff]
    %v1071 = vld [vmem:[#allocation7 + $0xa0] sm:$0xff]
    %v1072 = vld [vmem:[#allocation7 + $0xa8] sm:$0xff]
    %v1073 = vld [vmem:[#allocation7 + $0xb0] sm:$0xff]
    %v1074 = vld [vmem:[#allocation7 + $0xb8] sm:$0xff]
    %v1075 = vld [vmem:[#allocation7 + $0xc0] sm:$0xff]
    %v1076 = vld [vmem:[#allocation7 + $0xc8] sm:$0xff]
    %v1077 = vld [vmem:[#allocation7 + $0xd0] sm:$0xff]
    %v1078 = vld [vmem:[#allocation7 + $0xd8] sm:$0xff]
    %v1079 = vld [vmem:[#allocation7 + $0xe0] sm:$0xff]
    %v1080 = vld [vmem:[#allocation7 + $0xe8] sm:$0xff]
    %v1081 = vld [vmem:[#allocation7 + $0xf0] sm:$0xff]
    %v1082 = vld [vmem:[#allocation7 + $0xf8] sm:$0xff]
    %v1083 = vld [vmem:[#allocation7 + $0x100] sm:$0xff]
    %v1084 = vld [vmem:[#allocation7 + $0x108] sm:$0xff]
    %v1085 = vld [vmem:[#allocation7 + $0x110] sm:$0xff]
    %v1086 = vld [vmem:[#allocation7 + $0x118] sm:$0xff]
    %v1087 = vld [vmem:[#allocation7 + $0x120] sm:$0xff]
    %v1088 = vld [vmem:[#allocation7 + $0x128] sm:$0xff]
    %v1089 = vld [vmem:[#allocation7 + $0x130] sm:$0xff]
    %v1090 = vld [vmem:[#allocation7 + $0x138] sm:$0xff]
    %v1091 = vld [vmem:[#allocation7 + $0x140] sm:$0xff]
    %v1092 = vld [vmem:[#allocation7 + $0x148] sm:$0xff]
    %v1093 = vld [vmem:[#allocation7 + $0x150] sm:$0xff]
    %v1094 = vld [vmem:[#allocation7 + $0x158] sm:$0xff]
    %v1095 = vld [vmem:[#allocation7 + $0x160] sm:$0xff]
    %v1096 = vld [vmem:[#allocation7 + $0x168] sm:$0xff]
    %v1097 = vld [vmem:[#allocation7 + $0x170] sm:$0xff]
    %v1098 = vld [vmem:[#allocation7 + $0x178] sm:$0xff]
    %v1099 = vld [vmem:[#allocation7 + $0x180] sm:$0xff]
    %v1100 = vld [vmem:[#allocation7 + $0x188] sm:$0xff]
    %v1101 = vld [vmem:[#allocation7 + $0x190] sm:$0xff]
    %v1102 = vld [vmem:[#allocation7 + $0x198] sm:$0xff]
    %v1103 = vld [vmem:[#allocation7 + $0x1a0] sm:$0xff]
    %v1104 = vld [vmem:[#allocation7 + $0x1a8] sm:$0xff]
    %v1105 = vld [vmem:[#allocation7 + $0x1b0] sm:$0xff]
    %v1106 = vld [vmem:[#allocation7 + $0x1b8] sm:$0xff]
    %v1107 = vld [vmem:[#allocation7 + $0x1c0] sm:$0xff]
    %v1108 = vld [vmem:[#allocation7 + $0x1c8] sm:$0xff]
    %v1109 = vld [vmem:[#allocation7 + $0x1d0] sm:$0xff]
    %v1110 = vld [vmem:[#allocation7 + $0x1d8] sm:$0xff]
    %v1111 = vld [vmem:[#allocation7 + $0x1e0] sm:$0xff]
    %v1112 = vld [vmem:[#allocation7 + $0x1e8] sm:$0xff]
    %v1113 = vld [vmem:[#allocation7 + $0x1f0] sm:$0xff]
    %v1114 = vld [vmem:[#allocation7 + $0x1f8] sm:$0xff]
    %v1115 = vld [vmem:[%s4] sm:$0x3]
    %v1117 = vlaneseq
    %v1118 = vshrl.u32 %v1117, 7
    %v1119 = vsub.s32 0, %v1118
    %v1120 = vrot.slane %v1115, %v1119
    %v1121 = vlaneseq
    %v1122 = vshrl.u32 %v1121, 7
    %v1123 = vsub.s32 1, %v1122
    %v1124 = vrot.slane %v1115, %v1123
    %v1191 = vunpack.c.l.b16 %v1051
    %v1192 = vunpack.c.h.b16 %v1051
    %v1193 = vunpack.c.l.b16 %v1052
    %v1194 = vunpack.c.h.b16 %v1052
    %v1195 = vunpack.c.l.b16 %v1053
    %v1196 = vunpack.c.h.b16 %v1053
    %v1197 = vunpack.c.l.b16 %v1054
    %v1198 = vunpack.c.h.b16 %v1054
    %v1199 = vunpack.c.l.b16 %v1055
    %v1200 = vunpack.c.h.b16 %v1055
    %v1201 = vunpack.c.l.b16 %v1056
    %v1202 = vunpack.c.h.b16 %v1056
    %v1203 = vunpack.c.l.b16 %v1057
    %v1204 = vunpack.c.h.b16 %v1057
    %v1205 = vunpack.c.l.b16 %v1058
    %v1206 = vunpack.c.h.b16 %v1058
    %v1207 = vunpack.c.l.b16 %v1059
    %v1208 = vunpack.c.h.b16 %v1059
    %v1209 = vunpack.c.l.b16 %v1060
    %v1210 = vunpack.c.h.b16 %v1060
    %v1211 = vunpack.c.l.b16 %v1061
    %v1212 = vunpack.c.h.b16 %v1061
    %v1213 = vunpack.c.l.b16 %v1062
    %v1214 = vunpack.c.h.b16 %v1062
    %v1215 = vunpack.c.l.b16 %v1063
    %v1216 = vunpack.c.h.b16 %v1063
    %v1217 = vunpack.c.l.b16 %v1064
    %v1218 = vunpack.c.h.b16 %v1064
    %v1219 = vunpack.c.l.b16 %v1065
    %v1220 = vunpack.c.h.b16 %v1065
    %v1221 = vunpack.c.l.b16 %v1066
    %v1222 = vunpack.c.h.b16 %v1066
    %v1223 = vunpack.c.l.b16 %v1067
    %v1224 = vunpack.c.h.b16 %v1067
    %v1225 = vunpack.c.l.b16 %v1068
    %v1226 = vunpack.c.h.b16 %v1068
    %v1227 = vunpack.c.l.b16 %v1069
    %v1228 = vunpack.c.h.b16 %v1069
    %v1229 = vunpack.c.l.b16 %v1070
    %v1230 = vunpack.c.h.b16 %v1070
    %v1231 = vunpack.c.l.b16 %v1071
    %v1232 = vunpack.c.h.b16 %v1071
    %v1233 = vunpack.c.l.b16 %v1072
    %v1234 = vunpack.c.h.b16 %v1072
    %v1235 = vunpack.c.l.b16 %v1073
    %v1236 = vunpack.c.h.b16 %v1073
    %v1237 = vunpack.c.l.b16 %v1074
    %v1238 = vunpack.c.h.b16 %v1074
    %v1239 = vunpack.c.l.b16 %v1075
    %v1240 = vunpack.c.h.b16 %v1075
    %v1241 = vunpack.c.l.b16 %v1076
    %v1242 = vunpack.c.h.b16 %v1076
    %v1243 = vunpack.c.l.b16 %v1077
    %v1244 = vunpack.c.h.b16 %v1077
    %v1245 = vunpack.c.l.b16 %v1078
    %v1246 = vunpack.c.h.b16 %v1078
    %v1247 = vunpack.c.l.b16 %v1079
    %v1248 = vunpack.c.h.b16 %v1079
    %v1249 = vunpack.c.l.b16 %v1080
    %v1250 = vunpack.c.h.b16 %v1080
    %v1251 = vunpack.c.l.b16 %v1081
    %v1252 = vunpack.c.h.b16 %v1081
    %v1253 = vunpack.c.l.b16 %v1082
    %v1254 = vunpack.c.h.b16 %v1082
    %v1255 = vunpack.c.l.b16 %v1083
    %v1256 = vunpack.c.h.b16 %v1083
    %v1257 = vunpack.c.l.b16 %v1084
    %v1258 = vunpack.c.h.b16 %v1084
    %v1259 = vunpack.c.l.b16 %v1085
    %v1260 = vunpack.c.h.b16 %v1085
    %v1261 = vunpack.c.l.b16 %v1086
    %v1262 = vunpack.c.h.b16 %v1086
    %v1263 = vunpack.c.l.b16 %v1087
    %v1264 = vunpack.c.h.b16 %v1087
    %v1265 = vunpack.c.l.b16 %v1088
    %v1266 = vunpack.c.h.b16 %v1088
    %v1267 = vunpack.c.l.b16 %v1089
    %v1268 = vunpack.c.h.b16 %v1089
    %v1269 = vunpack.c.l.b16 %v1090
    %v1270 = vunpack.c.h.b16 %v1090
    %v1271 = vunpack.c.l.b16 %v1091
    %v1272 = vunpack.c.h.b16 %v1091
    %v1273 = vunpack.c.l.b16 %v1092
    %v1274 = vunpack.c.h.b16 %v1092
    %v1275 = vunpack.c.l.b16 %v1093
    %v1276 = vunpack.c.h.b16 %v1093
    %v1277 = vunpack.c.l.b16 %v1094
    %v1278 = vunpack.c.h.b16 %v1094
    %v1279 = vunpack.c.l.b16 %v1095
    %v1280 = vunpack.c.h.b16 %v1095
    %v1281 = vunpack.c.l.b16 %v1096
    %v1282 = vunpack.c.h.b16 %v1096
    %v1283 = vunpack.c.l.b16 %v1097
    %v1284 = vunpack.c.h.b16 %v1097
    %v1285 = vunpack.c.l.b16 %v1098
    %v1286 = vunpack.c.h.b16 %v1098
    %v1287 = vunpack.c.l.b16 %v1099
    %v1288 = vunpack.c.h.b16 %v1099
    %v1289 = vunpack.c.l.b16 %v1100
    %v1290 = vunpack.c.h.b16 %v1100
    %v1291 = vunpack.c.l.b16 %v1101
    %v1292 = vunpack.c.h.b16 %v1101
    %v1293 = vunpack.c.l.b16 %v1102
    %v1294 = vunpack.c.h.b16 %v1102
    %v1295 = vunpack.c.l.b16 %v1103
    %v1296 = vunpack.c.h.b16 %v1103
    %v1297 = vunpack.c.l.b16 %v1104
    %v1298 = vunpack.c.h.b16 %v1104
    %v1299 = vunpack.c.l.b16 %v1105
    %v1300 = vunpack.c.h.b16 %v1105
    %v1301 = vunpack.c.l.b16 %v1106
    %v1302 = vunpack.c.h.b16 %v1106
    %v1303 = vunpack.c.l.b16 %v1107
    %v1304 = vunpack.c.h.b16 %v1107
    %v1305 = vunpack.c.l.b16 %v1108
    %v1306 = vunpack.c.h.b16 %v1108
    %v1307 = vunpack.c.l.b16 %v1109
    %v1308 = vunpack.c.h.b16 %v1109
    %v1309 = vunpack.c.l.b16 %v1110
    %v1310 = vunpack.c.h.b16 %v1110
    %v1311 = vunpack.c.l.b16 %v1111
    %v1312 = vunpack.c.h.b16 %v1111
    %v1313 = vunpack.c.l.b16 %v1112
    %v1314 = vunpack.c.h.b16 %v1112
    %v1315 = vunpack.c.l.b16 %v1113
    %v1316 = vunpack.c.h.b16 %v1113
    %v1317 = vunpack.c.l.b16 %v1114
    %v1318 = vunpack.c.h.b16 %v1114
    %v1319 = vpack.c.b16 %v1193, %v1191
    %v1320 = vpack.c.b16 %v1194, %v1192
    %v1321 = vpack.c.b16 %v1197, %v1195
    %v1322 = vpack.c.b16 %v1198, %v1196
    %v1323 = vpack.c.b16 %v1201, %v1199
    %v1324 = vpack.c.b16 %v1202, %v1200
    %v1325 = vpack.c.b16 %v1205, %v1203
    %v1326 = vpack.c.b16 %v1206, %v1204
    %v1327 = vpack.c.b16 %v1209, %v1207
    %v1328 = vpack.c.b16 %v1210, %v1208
    %v1329 = vpack.c.b16 %v1213, %v1211
    %v1330 = vpack.c.b16 %v1214, %v1212
    %v1331 = vpack.c.b16 %v1217, %v1215
    %v1332 = vpack.c.b16 %v1218, %v1216
    %v1333 = vpack.c.b16 %v1221, %v1219
    %v1334 = vpack.c.b16 %v1222, %v1220
    %v1335 = vpack.c.b16 %v1225, %v1223
    %v1336 = vpack.c.b16 %v1226, %v1224
    %v1337 = vpack.c.b16 %v1229, %v1227
    %v1338 = vpack.c.b16 %v1230, %v1228
    %v1339 = vpack.c.b16 %v1233, %v1231
    %v1340 = vpack.c.b16 %v1234, %v1232
    %v1341 = vpack.c.b16 %v1237, %v1235
    %v1342 = vpack.c.b16 %v1238, %v1236
    %v1343 = vpack.c.b16 %v1241, %v1239
    %v1344 = vpack.c.b16 %v1242, %v1240
    %v1345 = vpack.c.b16 %v1245, %v1243
    %v1346 = vpack.c.b16 %v1246, %v1244
    %v1347 = vpack.c.b16 %v1249, %v1247
    %v1348 = vpack.c.b16 %v1250, %v1248
    %v1349 = vpack.c.b16 %v1253, %v1251
    %v1350 = vpack.c.b16 %v1254, %v1252
    %v1351 = vpack.c.b16 %v1257, %v1255
    %v1352 = vpack.c.b16 %v1258, %v1256
    %v1353 = vpack.c.b16 %v1261, %v1259
    %v1354 = vpack.c.b16 %v1262, %v1260
    %v1355 = vpack.c.b16 %v1265, %v1263
    %v1356 = vpack.c.b16 %v1266, %v1264
    %v1357 = vpack.c.b16 %v1269, %v1267
    %v1358 = vpack.c.b16 %v1270, %v1268
    %v1359 = vpack.c.b16 %v1273, %v1271
    %v1360 = vpack.c.b16 %v1274, %v1272
    %v1361 = vpack.c.b16 %v1277, %v1275
    %v1362 = vpack.c.b16 %v1278, %v1276
    %v1363 = vpack.c.b16 %v1281, %v1279
    %v1364 = vpack.c.b16 %v1282, %v1280
    %v1365 = vpack.c.b16 %v1285, %v1283
    %v1366 = vpack.c.b16 %v1286, %v1284
    %v1367 = vpack.c.b16 %v1289, %v1287
    %v1368 = vpack.c.b16 %v1290, %v1288
    %v1369 = vpack.c.b16 %v1293, %v1291
    %v1370 = vpack.c.b16 %v1294, %v1292
    %v1371 = vpack.c.b16 %v1297, %v1295
    %v1372 = vpack.c.b16 %v1298, %v1296
    %v1373 = vpack.c.b16 %v1301, %v1299
    %v1374 = vpack.c.b16 %v1302, %v1300
    %v1375 = vpack.c.b16 %v1305, %v1303
    %v1376 = vpack.c.b16 %v1306, %v1304
    %v1377 = vpack.c.b16 %v1309, %v1307
    %v1378 = vpack.c.b16 %v1310, %v1308
    %v1379 = vpack.c.b16 %v1313, %v1311
    %v1380 = vpack.c.b16 %v1314, %v1312
    %v1381 = vpack.c.b16 %v1317, %v1315
    %v1382 = vpack.c.b16 %v1318, %v1316
    %1447 = vmatprep.subr.bf16.mxu0 %v1320
    %1448 = vmatpush1.bf16.msra.mxu0 %v1319
    %1449 = vmatprep.subr.bf16.mxu0 %v1322
    %1450 = vmatpush1.bf16.msra.mxu0 %v1321
    %1451 = vmatprep.subr.bf16.mxu0 %v1324
    %1452 = vmatpush1.bf16.msra.mxu0 %v1323
    %1453 = vmatprep.subr.bf16.mxu0 %v1326
    %1454 = vmatpush1.bf16.msra.mxu0 %v1325
    %1455 = vmatprep.subr.bf16.mxu0 %v1328
    %1456 = vmatpush1.bf16.msra.mxu0 %v1327
    %1457 = vmatprep.subr.bf16.mxu0 %v1330
    %1458 = vmatpush1.bf16.msra.mxu0 %v1329
    %1459 = vmatprep.subr.bf16.mxu0 %v1332
    %1460 = vmatpush1.bf16.msra.mxu0 %v1331
    %1461 = vmatprep.subr.bf16.mxu0 %v1334
    %1462 = vmatpush1.bf16.msra.mxu0 %v1333
    %1463 = vmatprep.subr.bf16.mxu0 %v1336
    %1464 = vmatpush1.bf16.msra.mxu0 %v1335
    %1465 = vmatprep.subr.bf16.mxu0 %v1338
    %1466 = vmatpush1.bf16.msra.mxu0 %v1337
    %1467 = vmatprep.subr.bf16.mxu0 %v1340
    %1468 = vmatpush1.bf16.msra.mxu0 %v1339
    %1469 = vmatprep.subr.bf16.mxu0 %v1342
    %1470 = vmatpush1.bf16.msra.mxu0 %v1341
    %1471 = vmatprep.subr.bf16.mxu0 %v1344
    %1472 = vmatpush1.bf16.msra.mxu0 %v1343
    %1473 = vmatprep.subr.bf16.mxu0 %v1346
    %1474 = vmatpush1.bf16.msra.mxu0 %v1345
    %1475 = vmatprep.subr.bf16.mxu0 %v1348
    %1476 = vmatpush1.bf16.msra.mxu0 %v1347
    %1477 = vmatprep.subr.bf16.mxu0 %v1350
    %1478 = vmatpush1.bf16.msra.mxu0 %v1349
    %1479 = vmatprep.mubr.bf16.mxu0 %v1048
    %1480 = vmatmul.mubr.bf16.gmra.mrb[0].mxu0 %v1047
    %v1481 = vpop.f32.mrb[0].mxu0
    %v1482 = vadd.f32 %v1120, %v1481
    %v1483 = vpop.f32.mrb[0].mxu0
    %v1484 = vadd.f32 %v1124, %v1483
    %v1485 = vpop.f32.mrb[0].mxu0
    %v1486 = vpop.f32.mrb[0].mxu0
    %1487 = vdwg.mxu0
    %1488 = vmatprep.subr.bf16.mxu0 %v1352
    %1489 = vmatpush1.bf16.msra.mxu0 %v1351
    %1490 = vmatprep.subr.bf16.mxu0 %v1354
    %1491 = vmatpush1.bf16.msra.mxu0 %v1353
    %1492 = vmatprep.subr.bf16.mxu0 %v1356
    %1493 = vmatpush1.bf16.msra.mxu0 %v1355
    %1494 = vmatprep.subr.bf16.mxu0 %v1358
    %1495 = vmatpush1.bf16.msra.mxu0 %v1357
    %1496 = vmatprep.subr.bf16.mxu0 %v1360
    %1497 = vmatpush1.bf16.msra.mxu0 %v1359
    %1498 = vmatprep.subr.bf16.mxu0 %v1362
    %1499 = vmatpush1.bf16.msra.mxu0 %v1361
    %1500 = vmatprep.subr.bf16.mxu0 %v1364
    %1501 = vmatpush1.bf16.msra.mxu0 %v1363
    %1502 = vmatprep.subr.bf16.mxu0 %v1366
    %1503 = vmatpush1.bf16.msra.mxu0 %v1365
    %1504 = vmatprep.subr.bf16.mxu0 %v1368
    %1505 = vmatpush1.bf16.msra.mxu0 %v1367
    %1506 = vmatprep.subr.bf16.mxu0 %v1370
    %1507 = vmatpush1.bf16.msra.mxu0 %v1369
    %1508 = vmatprep.subr.bf16.mxu0 %v1372
    %1509 = vmatpush1.bf16.msra.mxu0 %v1371
    %1510 = vmatprep.subr.bf16.mxu0 %v1374
    %1511 = vmatpush1.bf16.msra.mxu0 %v1373
    %1512 = vmatprep.subr.bf16.mxu0 %v1376
    %1513 = vmatpush1.bf16.msra.mxu0 %v1375
    %1514 = vmatprep.subr.bf16.mxu0 %v1378
    %1515 = vmatpush1.bf16.msra.mxu0 %v1377
    %1516 = vmatprep.subr.bf16.mxu0 %v1380
    %1517 = vmatpush1.bf16.msra.mxu0 %v1379
    %1518 = vmatprep.subr.bf16.mxu0 %v1382
    %1519 = vmatpush1.bf16.msra.mxu0 %v1381
    %1520 = vmatprep.mubr.bf16.mxu0 %v1050
    %1521 = vmatmul.mubr.bf16.gmra.mrb[0].mxu0 %v1049
    %v1522 = vpop.f32.mrb[0].mxu0
    %v1523 = vadd.f32 %v1482, %v1522
    %v1524 = vpop.f32.mrb[0].mxu0
    %v1525 = vadd.f32 %v1484, %v1524
    %v1526 = vpop.f32.mrb[0].mxu0
    %v1527 = vpop.f32.mrb[0].mxu0
    %1528 = vdwg.mxu0
    %v1529 = vmax.f32 %v1523, 0.0
    %v1530 = vmax.f32 %v1525, 0.0
    %v1531 = vpack.c.bf16 %v1529, %v1529
    %v1532 = vpack.c.bf16 %v1530, %v1530
    %v1533 = vld [vmem:[#allocation8] sm:$0xf]
    %v1534 = vld [vmem:[#allocation8 + $0x4] sm:$0xf]
    %v1535 = vld [vmem:[#allocation8 + $0x8] sm:$0xf]
    %v1536 = vld [vmem:[#allocation8 + $0xc] sm:$0xf]
    %v1537 = vld [vmem:[#allocation8 + $0x10] sm:$0xf]
    %v1538 = vld [vmem:[#allocation8 + $0x14] sm:$0xf]
    %v1539 = vld [vmem:[#allocation8 + $0x18] sm:$0xf]
    %v1540 = vld [vmem:[#allocation8 + $0x1c] sm:$0xf]
    %v1541 = vld [vmem:[#allocation8 + $0x20] sm:$0xf]
    %v1542 = vld [vmem:[#allocation8 + $0x24] sm:$0xf]
    %v1543 = vld [vmem:[#allocation8 + $0x28] sm:$0xf]
    %v1544 = vld [vmem:[#allocation8 + $0x2c] sm:$0xf]
    %v1545 = vld [vmem:[#allocation8 + $0x30] sm:$0xf]
    %v1546 = vld [vmem:[#allocation8 + $0x34] sm:$0xf]
    %v1547 = vld [vmem:[#allocation8 + $0x38] sm:$0xf]
    %v1548 = vld [vmem:[#allocation8 + $0x3c] sm:$0xf]
    %v1549 = vld [vmem:[#allocation8 + $0x40] sm:$0xf]
    %v1550 = vld [vmem:[#allocation8 + $0x44] sm:$0xf]
    %v1551 = vld [vmem:[#allocation8 + $0x48] sm:$0xf]
    %v1552 = vld [vmem:[#allocation8 + $0x4c] sm:$0xf]
    %v1553 = vld [vmem:[#allocation8 + $0x50] sm:$0xf]
    %v1554 = vld [vmem:[#allocation8 + $0x54] sm:$0xf]
    %v1555 = vld [vmem:[#allocation8 + $0x58] sm:$0xf]
    %v1556 = vld [vmem:[#allocation8 + $0x5c] sm:$0xf]
    %v1557 = vld [vmem:[#allocation8 + $0x60] sm:$0xf]
    %v1558 = vld [vmem:[#allocation8 + $0x64] sm:$0xf]
    %v1559 = vld [vmem:[#allocation8 + $0x68] sm:$0xf]
    %v1560 = vld [vmem:[#allocation8 + $0x6c] sm:$0xf]
    %v1561 = vld [vmem:[#allocation8 + $0x70] sm:$0xf]
    %v1562 = vld [vmem:[#allocation8 + $0x74] sm:$0xf]
    %v1563 = vld [vmem:[#allocation8 + $0x78] sm:$0xf]
    %v1564 = vld [vmem:[#allocation8 + $0x7c] sm:$0xf]
    %v1565 = vld [vmem:[%s6] sm:$0x1]
    %v1567 = vlaneseq
    %v1568 = vshrl.u32 %v1567, 7
    %v1569 = vsub.s32 0, %v1568
    %v1570 = vrot.slane %v1565, %v1569
    %v1604 = vunpack.c.l.b16 %v1533
    %v1605 = vunpack.c.l.b16 %v1534
    %v1606 = vunpack.c.l.b16 %v1535
    %v1607 = vunpack.c.l.b16 %v1536
    %v1608 = vunpack.c.l.b16 %v1537
    %v1609 = vunpack.c.l.b16 %v1538
    %v1610 = vunpack.c.l.b16 %v1539
    %v1611 = vunpack.c.l.b16 %v1540
    %v1612 = vunpack.c.l.b16 %v1541
    %v1613 = vunpack.c.l.b16 %v1542
    %v1614 = vunpack.c.l.b16 %v1543
    %v1615 = vunpack.c.l.b16 %v1544
    %v1616 = vunpack.c.l.b16 %v1545
    %v1617 = vunpack.c.l.b16 %v1546
    %v1618 = vunpack.c.l.b16 %v1547
    %v1619 = vunpack.c.l.b16 %v1548
    %v1620 = vunpack.c.l.b16 %v1549
    %v1621 = vunpack.c.l.b16 %v1550
    %v1622 = vunpack.c.l.b16 %v1551
    %v1623 = vunpack.c.l.b16 %v1552
    %v1624 = vunpack.c.l.b16 %v1553
    %v1625 = vunpack.c.l.b16 %v1554
    %v1626 = vunpack.c.l.b16 %v1555
    %v1627 = vunpack.c.l.b16 %v1556
    %v1628 = vunpack.c.l.b16 %v1557
    %v1629 = vunpack.c.l.b16 %v1558
    %v1630 = vunpack.c.l.b16 %v1559
    %v1631 = vunpack.c.l.b16 %v1560
    %v1632 = vunpack.c.l.b16 %v1561
    %v1633 = vunpack.c.l.b16 %v1562
    %v1634 = vunpack.c.l.b16 %v1563
    %v1635 = vunpack.c.l.b16 %v1564
    %v1636 = vpack.c.b16 %v1605, %v1604
    %v1637 = vpack.c.b16 %v1607, %v1606
    %v1638 = vpack.c.b16 %v1609, %v1608
    %v1639 = vpack.c.b16 %v1611, %v1610
    %v1640 = vpack.c.b16 %v1613, %v1612
    %v1641 = vpack.c.b16 %v1615, %v1614
    %v1642 = vpack.c.b16 %v1617, %v1616
    %v1643 = vpack.c.b16 %v1619, %v1618
    %v1644 = vpack.c.b16 %v1621, %v1620
    %v1645 = vpack.c.b16 %v1623, %v1622
    %v1646 = vpack.c.b16 %v1625, %v1624
    %v1647 = vpack.c.b16 %v1627, %v1626
    %v1648 = vpack.c.b16 %v1629, %v1628
    %v1649 = vpack.c.b16 %v1631, %v1630
    %v1650 = vpack.c.b16 %v1633, %v1632
    %v1651 = vpack.c.b16 %v1635, %v1634
    %1668 = vmatprep.subr.bf16.mxu0 0
    %1669 = vmatpush1.bf16.msra.mxu0 %v1636
    %1670 = vmatprep.subr.bf16.mxu0 0
    %1671 = vmatpush1.bf16.msra.mxu0 %v1637
    %1672 = vmatprep.subr.bf16.mxu0 0
    %1673 = vmatpush1.bf16.msra.mxu0 %v1638
    %1674 = vmatprep.subr.bf16.mxu0 0
    %1675 = vmatpush1.bf16.msra.mxu0 %v1639
    %1676 = vmatprep.subr.bf16.mxu0 0
    %1677 = vmatpush1.bf16.msra.mxu0 %v1640
    %1678 = vmatprep.subr.bf16.mxu0 0
    %1679 = vmatpush1.bf16.msra.mxu0 %v1641
    %1680 = vmatprep.subr.bf16.mxu0 0
    %1681 = vmatpush1.bf16.msra.mxu0 %v1642
    %1682 = vmatprep.subr.bf16.mxu0 0
    %1683 = vmatpush1.bf16.msra.mxu0 %v1643
    %1684 = vmatprep.subr.bf16.mxu0 0
    %1685 = vmatpush1.bf16.msra.mxu0 %v1644
    %1686 = vmatprep.subr.bf16.mxu0 0
    %1687 = vmatpush1.bf16.msra.mxu0 %v1645
    %1688 = vmatprep.subr.bf16.mxu0 0
    %1689 = vmatpush1.bf16.msra.mxu0 %v1646
    %1690 = vmatprep.subr.bf16.mxu0 0
    %1691 = vmatpush1.bf16.msra.mxu0 %v1647
    %1692 = vmatprep.subr.bf16.mxu0 0
    %1693 = vmatpush1.bf16.msra.mxu0 %v1648
    %1694 = vmatprep.subr.bf16.mxu0 0
    %1695 = vmatpush1.bf16.msra.mxu0 %v1649
    %1696 = vmatprep.subr.bf16.mxu0 0
    %1697 = vmatpush1.bf16.msra.mxu0 %v1650
    %1698 = vmatprep.subr.bf16.mxu0 0
    %1699 = vmatpush1.bf16.msra.mxu0 %v1651
    %1700 = vmatprep.mubr.bf16.mxu0 %v1532
    %1701 = vmatmul.mubr.bf16.gmra.mrb[0].mxu0 %v1531
    %v1702 = vpop.f32.mrb[0].mxu0
    %v1703 = vadd.f32 %v1570, %v1702
    %v1704 = vpop.f32.mrb[0].mxu0
    %v1705 = vpop.f32.mrb[0].mxu0
    %v1706 = vpop.f32.mrb[0].mxu0
    %1707 = vdwg.mxu0
    %v1708 = vlaneseq
    %v1709 = vand.u32 %v1708, 127
    %vm1710 = vcmp.lt.s32.totalorder %v1709, 2
    %v1711 = vsel %vm1710, %v1703, -1e+30
    %1712 = vmax.xlane.f32.xlu0 %v1711
    %v1713 = vpop.xlane.xlu0 %1712
    %v1714 = vsub.f32 %v1711, %v1713
    %v1715 = vmul.f32 %v1714, 1.442695
    %v1716 = vpow.pop %v1715
    %1717 = vadd.xlane.f32.xlu0 %v1716
    %v1718 = vpop.xlane.xlu0 %1717
    %v1719 = vlog2.pop %v1718
    %v1720 = vmul.f32 %v1719, 0.6931472
    %v1721 = vadd.f32 %v1713, %v1720
    %v1722 = vsub.f32 %v1711, %v1721
    %1723 = vst [vmem:[#allocation10] sm:$0xff] %v1722
    // Predicated region
    $region46: #{tpu_custom_call.1} parent=1 // pred_check
      _
    $region47: #{tpu_custom_call.1} parent=1 // pred_check_branch
      %1725 = sbr.rel (0) target = $region49
    $region48: #{tpu_custom_call.1} parent=1 // pred_region
      %s1727 = ssub.s32 128, 128
      %1728 = vsyncadd [#allocation4], %s1727
      %s1730 = sshll.u32 [#allocation10], 4
      %s1731 = int_to_ptr.vmem [resolvable:$true] %s1730
      %1733 = dma.vmem_to_hbm [thread:$0]  %s1731, 128, %s7, [#allocation4]
    $region49: #{tpu_custom_call.1} parent=1 // pred_fallthru
      _
    // Predicated region
    $region50: #{tpu_custom_call.1} parent=1 // pred_check
      _
    $region51: #{tpu_custom_call.1} parent=1 // pred_check_branch
      %1735 = sbr.rel (0) target = $region53
    $region52: #{tpu_custom_call.1} parent=1 // pred_region
      %1736 = dma.done [#allocation4], 128
    $region53: #{tpu_custom_call.1} parent=1 // pred_fallthru
      _
    %1737 = vsyncpa [#allocation3], 1
    %1738 = vsyncpa [#allocation6], 1
    %1739 = vsyncpa [#allocation9], 1
    %1740 = vsyncpa [#allocation4], 1

</llo_original>
